<compile_context>
chip_gen: v7x
topology: tpu7x:2x2x1
jax: 0.10.0
libtpu: 0.0.40
codegen_flags: <defaults>
</compile_context>

<pallas_src>
import jax
import jax.numpy as jnp
from jax.experimental import pallas as pl
from jax.experimental.pallas import tpu as pltpu

# (in, out) sizes of fc1, fc2, fc3, fc6, fc7, fc8, fc9
LAYER_DIMS = [(72, 128), (128, 256), (256, 512), (512, 256),
              (256, 128), (128, 64), (64, 4)]
IN_DIM = LAYER_DIMS[0][0]      # 72
OUT_DIM = LAYER_DIMS[-1][1]    # 4

MAX_TB = 1024     # batch-tile cap (f32 kernel input => tile multiple of 8)
MIN_SPLIT = 256   # force >= 2 grid steps once batch >= 2*MIN_SPLIT (v7x: 2 TCs)


def _cdiv(a, b):
    return -(-a // b)


def _round_up(n, m):
    return _cdiv(n, m) * m


def _choose_tiling(batch):
    """Pick (tile, padded_batch) minimizing padded rows under MAX_TB."""
    num_tiles = max(_cdiv(batch, MAX_TB), 2 if batch >= 2 * MIN_SPLIT else 1)
    tb = _round_up(_cdiv(batch, num_tiles), 8)   # f32 input: sublane multiple of 8
    return tb, num_tiles * tb


def _mlp_kernel(x_ref,
                w1, b1, w2, b2, w3, b3, w6, b6, w7, b7, w8, b8, w9, b9,
                o_ref):
    """Fused 7-layer MLP on one (TB, 72) batch tile -> (TB, 4) output tile."""

    def dense(h, w_ref, b_ref, relu):
        # bf16 x bf16 -> f32 accumulate on the MXU; bias add / ReLU in f32.
        y = jnp.dot(h, w_ref[...], preferred_element_type=jnp.float32)
        y = y + b_ref[...]                       # (1, out) broadcasts over rows
        if relu:
            # Keep inter-layer activations bf16: halves spill traffic and is
            # the dtype the next matmul consumes anyway.
            return jnp.maximum(y, 0.0).astype(jnp.bfloat16)
        return y

    h = x_ref[...].astype(jnp.bfloat16)          # (TB, 72)
    h = dense(h, w1, b1, relu=True)
    h = dense(h, w2, b2, relu=True)
    h = dense(h, w3, b3, relu=True)
    h = dense(h, w6, b6, relu=True)
    h = dense(h, w7, b7, relu=True)
    h = dense(h, w8, b8, relu=True)
    o_ref[...] = dense(h, w9, b9, relu=False).astype(o_ref.dtype)   # (TB, 4)


def prepare_params(params):
    """Cast weights to bf16; biases to f32 reshaped to (1, out).  No padding."""
    return [(w.astype(jnp.bfloat16), b.astype(jnp.float32).reshape(1, -1))
            for (w, b) in params]


def simple_diffmot_forward(conditions, prepared_params, *, core_parallel=False):
    """conditions: (B, 9, 8) float32.  prepared_params: output of prepare_params."""
    batch = conditions.shape[0]
    x = conditions.reshape(batch, -1).astype(jnp.float32)   # (B, 72) no-copy view
    assert x.shape[1] == IN_DIM

    tb, b_pad = _choose_tiling(batch)
    if b_pad != batch:
        x = jnp.pad(x, ((0, b_pad - batch), (0, 0)))         # batch padding only

    flat_args = [x]
    in_specs = [pl.BlockSpec((tb, IN_DIM), lambda i: (i, 0))]
    for (w, b2d) in prepared_params:
        # Constant index_map keeps weights/biases VMEM-resident across grid
        # steps (no re-issued DMA).  pipeline_mode=pl.Buffered(1) would also
        # drop the redundant second weight buffer (~0.7 MiB total), but VMEM
        # is nowhere near the limit for this model, so default buffering is kept.
        flat_args.append(w)
        in_specs.append(pl.BlockSpec(w.shape, lambda i: (0, 0)))
        flat_args.append(b2d)
        in_specs.append(pl.BlockSpec(b2d.shape, lambda i: (0, 0)))

    # Advisory cost estimate so XLA can schedule neighbors to overlap this call.
    flops_per_row = 2 * sum(di * do for di, do in LAYER_DIMS)
    weight_bytes = sum(int(w.size) * w.dtype.itemsize +
                       int(b.size) * b.dtype.itemsize
                       for (w, b) in prepared_params)
    bytes_accessed = weight_bytes + b_pad * (IN_DIM * 4 + OUT_DIM * 4)
    cost = pl.CostEstimate(flops=flops_per_row * b_pad,
                           transcendentals=0,
                           bytes_accessed=bytes_accessed)

    batch_sem = pltpu.CORE_PARALLEL if core_parallel else "parallel"

    out = pl.pallas_call(
        _mlp_kernel,
        out_shape=jax.ShapeDtypeStruct((b_pad, OUT_DIM), jnp.float32),
        grid_spec=pltpu.PrefetchScalarGridSpec(
            num_scalar_prefetch=0,
            grid=(b_pad // tb,),
            in_specs=in_specs,
            out_specs=pl.BlockSpec((tb, OUT_DIM), lambda i: (i, 0)),
        ),
        compiler_params=pltpu.CompilerParams(
            dimension_semantics=(batch_sem,)),    # batch is embarrassingly parallel
        cost_estimate=cost,
    )(*flat_args)

    return out[:batch] if b_pad != batch else out


def init_params(key):
    """Deterministic synthetic parameters matching nn.Linear shapes (stored (in, out))."""
    params = []
    for (d_in, d_out) in LAYER_DIMS:
        key, kw, kb = jax.random.split(key, 3)
        bound = 1.0 / jnp.sqrt(jnp.float32(d_in))
        w = jax.random.uniform(kw, (d_in, d_out), jnp.float32, -bound, bound)
        b = jax.random.uniform(kb, (d_out,), jnp.float32, -bound, bound)
        params.append((w, b))
    return params


if __name__ == "__main__":
    key = jax.random.PRNGKey(0)
    key, kx = jax.random.split(key)

    batch = 2
    # conditions: (batch, 9, 8) as implied by fc1 = Linear((4 + 5) * 8, 128)
    conditions = jax.random.normal(kx, (batch, 9, 8), dtype=jnp.float32)

    params = init_params(key)
    prepared = prepare_params(params)

    delta_bbox = simple_diffmot_forward(conditions, prepared)
    jax.block_until_ready(delta_bbox)

    # Pure-JAX reference with matching bf16-weight / bf16-activation input,
    # f32-accumulate semantics.  Note: bf16 weight storage makes outputs
    # differ from an all-f32 PyTorch reference at ~1e-2 relative level.
    def ref_forward(conds, raw_params):
        h = conds.reshape(conds.shape[0], -1)
        for i, (w, b) in enumerate(raw_params):
            h = jnp.dot(h.astype(jnp.bfloat16), w.astype(jnp.bfloat16),
                        preferred_element_type=jnp.float32) + b
            if i < len(raw_params) - 1:
                h = jnp.maximum(h, 0.0)
        return h

    ref = ref_forward(conditions, params)
    assert delta_bbox.shape == (batch, 4)
    assert jnp.allclose(delta_bbox, ref, atol=1e-2, rtol=1e-2)

    print("KERNEL_OK")
</pallas_src>

<mosaic_0001>
module attributes {stable_mosaic.version = 11 : i64} {
  func.func @_mlp_kernel(%arg0: i32, %arg1: memref<8x72xf32, #tpu.memory_space<vmem>>, %arg2: memref<72x128xbf16, #tpu.memory_space<vmem>>, %arg3: memref<1x128xf32, #tpu.memory_space<vmem>>, %arg4: memref<128x256xbf16, #tpu.memory_space<vmem>>, %arg5: memref<1x256xf32, #tpu.memory_space<vmem>>, %arg6: memref<256x512xbf16, #tpu.memory_space<vmem>>, %arg7: memref<1x512xf32, #tpu.memory_space<vmem>>, %arg8: memref<512x256xbf16, #tpu.memory_space<vmem>>, %arg9: memref<1x256xf32, #tpu.memory_space<vmem>>, %arg10: memref<256x128xbf16, #tpu.memory_space<vmem>>, %arg11: memref<1x128xf32, #tpu.memory_space<vmem>>, %arg12: memref<128x64xbf16, #tpu.memory_space<vmem>>, %arg13: memref<1x64xf32, #tpu.memory_space<vmem>>, %arg14: memref<64x4xbf16, #tpu.memory_space<vmem>>, %arg15: memref<1x4xf32, #tpu.memory_space<vmem>>, %arg16: memref<8x4xf32, #tpu.memory_space<vmem>>) attributes {dimension_semantics = [#tpu.dimension_semantics<parallel>], iteration_bounds = array<i64: 1>, scalar_prefetch = 0 : i64, scratch_operands = 0 : i64, tpu.core_type = #tpu.core_type<tc>, window_params = [{transform_indices = @transform_0, window_bounds = array<i64: 8, 72>}, {pipeline_mode = #tpu.pipeline_mode<synchronous>, transform_indices = @transform_1, window_bounds = array<i64: 72, 128>}, {pipeline_mode = #tpu.pipeline_mode<synchronous>, transform_indices = @transform_2, window_bounds = array<i64: 1, 128>}, {pipeline_mode = #tpu.pipeline_mode<synchronous>, transform_indices = @transform_3, window_bounds = array<i64: 128, 256>}, {pipeline_mode = #tpu.pipeline_mode<synchronous>, transform_indices = @transform_4, window_bounds = array<i64: 1, 256>}, {pipeline_mode = #tpu.pipeline_mode<synchronous>, transform_indices = @transform_5, window_bounds = array<i64: 256, 512>}, {pipeline_mode = #tpu.pipeline_mode<synchronous>, transform_indices = @transform_6, window_bounds = array<i64: 1, 512>}, {pipeline_mode = #tpu.pipeline_mode<synchronous>, transform_indices = @transform_7, window_bounds = array<i64: 512, 256>}, {pipeline_mode = #tpu.pipeline_mode<synchronous>, transform_indices = @transform_8, window_bounds = array<i64: 1, 256>}, {pipeline_mode = #tpu.pipeline_mode<synchronous>, transform_indices = @transform_9, window_bounds = array<i64: 256, 128>}, {pipeline_mode = #tpu.pipeline_mode<synchronous>, transform_indices = @transform_10, window_bounds = array<i64: 1, 128>}, {pipeline_mode = #tpu.pipeline_mode<synchronous>, transform_indices = @transform_11, window_bounds = array<i64: 128, 64>}, {pipeline_mode = #tpu.pipeline_mode<synchronous>, transform_indices = @transform_12, window_bounds = array<i64: 1, 64>}, {pipeline_mode = #tpu.pipeline_mode<synchronous>, transform_indices = @transform_13, window_bounds = array<i64: 64, 4>}, {pipeline_mode = #tpu.pipeline_mode<synchronous>, transform_indices = @transform_14, window_bounds = array<i64: 1, 4>}, {transform_indices = @transform_15, window_bounds = array<i64: 8, 4>}]} {
    %c0 = arith.constant 0 : index
    %c0_0 = arith.constant 0 : index
    %0 = vector.load %arg1[%c0, %c0_0] : memref<8x72xf32, #tpu.memory_space<vmem>>, vector<8x72xf32>
    %1 = arith.truncf %0 : vector<8x72xf32> to vector<8x72xbf16>
    %c0_1 = arith.constant 0 : index
    %c0_2 = arith.constant 0 : index
    %2 = vector.load %arg2[%c0_1, %c0_2] : memref<72x128xbf16, #tpu.memory_space<vmem>>, vector<72x128xbf16>
    %cst = arith.constant dense<0.000000e+00> : vector<8x128xf32>
    %3 = tpu.matmul %1, %2, %cst {dimension_numbers = #tpu.dot_dimension_numbers<[1], [0], [0], [1], [0, 0, 1, 1], [], []>} : vector<8x72xbf16>, vector<72x128xbf16>, vector<8x128xf32> -> vector<8x128xf32>
    %c0_3 = arith.constant 0 : index
    %c0_4 = arith.constant 0 : index
    %4 = vector.load %arg3[%c0_3, %c0_4] : memref<1x128xf32, #tpu.memory_space<vmem>>, vector<1x128xf32>
    %5 = vector.broadcast %4 : vector<1x128xf32> to vector<8x128xf32>
    %6 = arith.addf %3, %5 : vector<8x128xf32>
    %cst_5 = arith.constant 0.000000e+00 : f32
    %7 = vector.broadcast %cst_5 : f32 to vector<8x128xf32>
    %8 = arith.maximumf %6, %7 : vector<8x128xf32>
    %9 = arith.truncf %8 : vector<8x128xf32> to vector<8x128xbf16>
    %c0_6 = arith.constant 0 : index
    %c0_7 = arith.constant 0 : index
    %10 = vector.load %arg4[%c0_6, %c0_7] : memref<128x256xbf16, #tpu.memory_space<vmem>>, vector<128x256xbf16>
    %cst_8 = arith.constant dense<0.000000e+00> : vector<8x256xf32>
    %11 = tpu.matmul %9, %10, %cst_8 {dimension_numbers = #tpu.dot_dimension_numbers<[1], [0], [0], [1], [0, 0, 1, 1], [], []>} : vector<8x128xbf16>, vector<128x256xbf16>, vector<8x256xf32> -> vector<8x256xf32>
    %c0_9 = arith.constant 0 : index
    %c0_10 = arith.constant 0 : index
    %12 = vector.load %arg5[%c0_9, %c0_10] : memref<1x256xf32, #tpu.memory_space<vmem>>, vector<1x256xf32>
    %13 = vector.broadcast %12 : vector<1x256xf32> to vector<8x256xf32>
    %14 = arith.addf %11, %13 : vector<8x256xf32>
    %cst_11 = arith.constant 0.000000e+00 : f32
    %15 = vector.broadcast %cst_11 : f32 to vector<8x256xf32>
    %16 = arith.maximumf %14, %15 : vector<8x256xf32>
    %17 = arith.truncf %16 : vector<8x256xf32> to vector<8x256xbf16>
    %c0_12 = arith.constant 0 : index
    %c0_13 = arith.constant 0 : index
    %18 = vector.load %arg6[%c0_12, %c0_13] : memref<256x512xbf16, #tpu.memory_space<vmem>>, vector<256x512xbf16>
    %cst_14 = arith.constant dense<0.000000e+00> : vector<8x512xf32>
    %19 = tpu.matmul %17, %18, %cst_14 {dimension_numbers = #tpu.dot_dimension_numbers<[1], [0], [0], [1], [0, 0, 1, 1], [], []>} : vector<8x256xbf16>, vector<256x512xbf16>, vector<8x512xf32> -> vector<8x512xf32>
    %c0_15 = arith.constant 0 : index
    %c0_16 = arith.constant 0 : index
    %20 = vector.load %arg7[%c0_15, %c0_16] : memref<1x512xf32, #tpu.memory_space<vmem>>, vector<1x512xf32>
    %21 = vector.broadcast %20 : vector<1x512xf32> to vector<8x512xf32>
    %22 = arith.addf %19, %21 : vector<8x512xf32>
    %cst_17 = arith.constant 0.000000e+00 : f32
    %23 = vector.broadcast %cst_17 : f32 to vector<8x512xf32>
    %24 = arith.maximumf %22, %23 : vector<8x512xf32>
    %25 = arith.truncf %24 : vector<8x512xf32> to vector<8x512xbf16>
    %c0_18 = arith.constant 0 : index
    %c0_19 = arith.constant 0 : index
    %26 = vector.load %arg8[%c0_18, %c0_19] : memref<512x256xbf16, #tpu.memory_space<vmem>>, vector<512x256xbf16>
    %cst_20 = arith.constant dense<0.000000e+00> : vector<8x256xf32>
    %27 = tpu.matmul %25, %26, %cst_20 {dimension_numbers = #tpu.dot_dimension_numbers<[1], [0], [0], [1], [0, 0, 1, 1], [], []>} : vector<8x512xbf16>, vector<512x256xbf16>, vector<8x256xf32> -> vector<8x256xf32>
    %c0_21 = arith.constant 0 : index
    %c0_22 = arith.constant 0 : index
    %28 = vector.load %arg9[%c0_21, %c0_22] : memref<1x256xf32, #tpu.memory_space<vmem>>, vector<1x256xf32>
    %29 = vector.broadcast %28 : vector<1x256xf32> to vector<8x256xf32>
    %30 = arith.addf %27, %29 : vector<8x256xf32>
    %cst_23 = arith.constant 0.000000e+00 : f32
    %31 = vector.broadcast %cst_23 : f32 to vector<8x256xf32>
    %32 = arith.maximumf %30, %31 : vector<8x256xf32>
    %33 = arith.truncf %32 : vector<8x256xf32> to vector<8x256xbf16>
    %c0_24 = arith.constant 0 : index
    %c0_25 = arith.constant 0 : index
    %34 = vector.load %arg10[%c0_24, %c0_25] : memref<256x128xbf16, #tpu.memory_space<vmem>>, vector<256x128xbf16>
    %cst_26 = arith.constant dense<0.000000e+00> : vector<8x128xf32>
    %35 = tpu.matmul %33, %34, %cst_26 {dimension_numbers = #tpu.dot_dimension_numbers<[1], [0], [0], [1], [0, 0, 1, 1], [], []>} : vector<8x256xbf16>, vector<256x128xbf16>, vector<8x128xf32> -> vector<8x128xf32>
    %c0_27 = arith.constant 0 : index
    %c0_28 = arith.constant 0 : index
    %36 = vector.load %arg11[%c0_27, %c0_28] : memref<1x128xf32, #tpu.memory_space<vmem>>, vector<1x128xf32>
    %37 = vector.broadcast %36 : vector<1x128xf32> to vector<8x128xf32>
    %38 = arith.addf %35, %37 : vector<8x128xf32>
    %cst_29 = arith.constant 0.000000e+00 : f32
    %39 = vector.broadcast %cst_29 : f32 to vector<8x128xf32>
    %40 = arith.maximumf %38, %39 : vector<8x128xf32>
    %41 = arith.truncf %40 : vector<8x128xf32> to vector<8x128xbf16>
    %c0_30 = arith.constant 0 : index
    %c0_31 = arith.constant 0 : index
    %42 = vector.load %arg12[%c0_30, %c0_31] : memref<128x64xbf16, #tpu.memory_space<vmem>>, vector<128x64xbf16>
    %cst_32 = arith.constant dense<0.000000e+00> : vector<8x64xf32>
    %43 = tpu.matmul %41, %42, %cst_32 {dimension_numbers = #tpu.dot_dimension_numbers<[1], [0], [0], [1], [0, 0, 1, 1], [], []>} : vector<8x128xbf16>, vector<128x64xbf16>, vector<8x64xf32> -> vector<8x64xf32>
    %c0_33 = arith.constant 0 : index
    %c0_34 = arith.constant 0 : index
    %44 = vector.load %arg13[%c0_33, %c0_34] : memref<1x64xf32, #tpu.memory_space<vmem>>, vector<1x64xf32>
    %45 = vector.broadcast %44 : vector<1x64xf32> to vector<8x64xf32>
    %46 = arith.addf %43, %45 : vector<8x64xf32>
    %cst_35 = arith.constant 0.000000e+00 : f32
    %47 = vector.broadcast %cst_35 : f32 to vector<8x64xf32>
    %48 = arith.maximumf %46, %47 : vector<8x64xf32>
    %49 = arith.truncf %48 : vector<8x64xf32> to vector<8x64xbf16>
    %c0_36 = arith.constant 0 : index
    %c0_37 = arith.constant 0 : index
    %50 = vector.load %arg14[%c0_36, %c0_37] : memref<64x4xbf16, #tpu.memory_space<vmem>>, vector<64x4xbf16>
    %cst_38 = arith.constant dense<0.000000e+00> : vector<8x4xf32>
    %51 = tpu.matmul %49, %50, %cst_38 {dimension_numbers = #tpu.dot_dimension_numbers<[1], [0], [0], [1], [0, 0, 1, 1], [], []>} : vector<8x64xbf16>, vector<64x4xbf16>, vector<8x4xf32> -> vector<8x4xf32>
    %c0_39 = arith.constant 0 : index
    %c0_40 = arith.constant 0 : index
    %52 = vector.load %arg15[%c0_39, %c0_40] : memref<1x4xf32, #tpu.memory_space<vmem>>, vector<1x4xf32>
    %53 = vector.broadcast %52 : vector<1x4xf32> to vector<8x4xf32>
    %54 = arith.addf %51, %53 : vector<8x4xf32>
    %c0_41 = arith.constant 0 : index
    %c0_42 = arith.constant 0 : index
    %55 = vector.load %arg16[%c0_41, %c0_42] : memref<8x4xf32, #tpu.memory_space<vmem>>, vector<8x4xf32>
    tpu.vector_store %arg16[%c0_41, %c0_42], %54 {strides = array<i32>} : memref<8x4xf32, #tpu.memory_space<vmem>>, vector<8x4xf32>,
    return
  }
  func.func @transform_0(%arg0: i32) -> (i32, i32) {
    %c0_i32 = arith.constant 0 : i32
    %c0_i32_0 = arith.constant 0 : i32
    return %arg0, %c0_i32 : i32, i32
  }
  func.func @transform_1(%arg0: i32) -> (i32, i32) {
    %c0_i32 = arith.constant 0 : i32
    %c0_i32_0 = arith.constant 0 : i32
    %c0_i32_1 = arith.constant 0 : i32
    return %c0_i32, %c0_i32_0 : i32, i32
  }
  func.func @transform_2(%arg0: i32) -> (i32, i32) {
    %c0_i32 = arith.constant 0 : i32
    %c0_i32_0 = arith.constant 0 : i32
    %c0_i32_1 = arith.constant 0 : i32
    return %c0_i32, %c0_i32_0 : i32, i32
  }
  func.func @transform_3(%arg0: i32) -> (i32, i32) {
    %c0_i32 = arith.constant 0 : i32
    %c0_i32_0 = arith.constant 0 : i32
    %c0_i32_1 = arith.constant 0 : i32
    return %c0_i32, %c0_i32_0 : i32, i32
  }
  func.func @transform_4(%arg0: i32) -> (i32, i32) {
    %c0_i32 = arith.constant 0 : i32
    %c0_i32_0 = arith.constant 0 : i32
    %c0_i32_1 = arith.constant 0 : i32
    return %c0_i32, %c0_i32_0 : i32, i32
  }
  func.func @transform_5(%arg0: i32) -> (i32, i32) {
    %c0_i32 = arith.constant 0 : i32
    %c0_i32_0 = arith.constant 0 : i32
    %c0_i32_1 = arith.constant 0 : i32
    return %c0_i32, %c0_i32_0 : i32, i32
  }
  func.func @transform_6(%arg0: i32) -> (i32, i32) {
    %c0_i32 = arith.constant 0 : i32
    %c0_i32_0 = arith.constant 0 : i32
    %c0_i32_1 = arith.constant 0 : i32
    return %c0_i32, %c0_i32_0 : i32, i32
  }
  func.func @transform_7(%arg0: i32) -> (i32, i32) {
    %c0_i32 = arith.constant 0 : i32
    %c0_i32_0 = arith.constant 0 : i32
    %c0_i32_1 = arith.constant 0 : i32
    return %c0_i32, %c0_i32_0 : i32, i32
  }
  func.func @transform_8(%arg0: i32) -> (i32, i32) {
    %c0_i32 = arith.constant 0 : i32
    %c0_i32_0 = arith.constant 0 : i32
    %c0_i32_1 = arith.constant 0 : i32
    return %c0_i32, %c0_i32_0 : i32, i32
  }
  func.func @transform_9(%arg0: i32) -> (i32, i32) {
    %c0_i32 = arith.constant 0 : i32
    %c0_i32_0 = arith.constant 0 : i32
    %c0_i32_1 = arith.constant 0 : i32
    return %c0_i32, %c0_i32_0 : i32, i32
  }
  func.func @transform_10(%arg0: i32) -> (i32, i32) {
    %c0_i32 = arith.constant 0 : i32
    %c0_i32_0 = arith.constant 0 : i32
    %c0_i32_1 = arith.constant 0 : i32
    return %c0_i32, %c0_i32_0 : i32, i32
  }
  func.func @transform_11(%arg0: i32) -> (i32, i32) {
    %c0_i32 = arith.constant 0 : i32
    %c0_i32_0 = arith.constant 0 : i32
    %c0_i32_1 = arith.constant 0 : i32
    return %c0_i32, %c0_i32_0 : i32, i32
  }
  func.func @transform_12(%arg0: i32) -> (i32, i32) {
    %c0_i32 = arith.constant 0 : i32
    %c0_i32_0 = arith.constant 0 : i32
    %c0_i32_1 = arith.constant 0 : i32
    return %c0_i32, %c0_i32_0 : i32, i32
  }
  func.func @transform_13(%arg0: i32) -> (i32, i32) {
    %c0_i32 = arith.constant 0 : i32
    %c0_i32_0 = arith.constant 0 : i32
    %c0_i32_1 = arith.constant 0 : i32
    return %c0_i32, %c0_i32_0 : i32, i32
  }
  func.func @transform_14(%arg0: i32) -> (i32, i32) {
    %c0_i32 = arith.constant 0 : i32
    %c0_i32_0 = arith.constant 0 : i32
    %c0_i32_1 = arith.constant 0 : i32
    return %c0_i32, %c0_i32_0 : i32, i32
  }
  func.func @transform_15(%arg0: i32) -> (i32, i32) {
    %c0_i32 = arith.constant 0 : i32
    %c0_i32_0 = arith.constant 0 : i32
    return %arg0, %c0_i32 : i32, i32
  }
}

</mosaic_0001>

<llo_original>
// kernel: tpu_custom_call.1
$region0: #{tpu_custom_call.1}
  #allocation0 [shape = 'u32[]', space=smem, size = 0x4, offset = 0x4, fixed_abs, tag = 'smem constant byte address 0x4 - core index']
  #allocation1 [shape = 'u32[144,128]{1,0:T(1,128)}', space=vmem, size = 0x12000, scoped, tag = 'internal scratch']
  %s0 = inlined_call_operand.hbm [shape: f32[8,72], index: 0, kind: input, shape index: {}]
  %s1 = inlined_call_operand.hbm [shape: bf16[72,128], index: 1, kind: input, shape index: {}]
  %s2 = inlined_call_operand.hbm [shape: f32[1,128], index: 2, kind: input, shape index: {}]
  %s3 = inlined_call_operand.vmem [shape: bf16[128,256], index: 3, kind: input, shape index: {}]
  %s4 = inlined_call_operand.hbm [shape: f32[1,256], index: 4, kind: input, shape index: {}]
  %s5 = inlined_call_operand.hbm [shape: bf16[256,512], index: 5, kind: input, shape index: {}]
  %s6 = inlined_call_operand.hbm [shape: f32[1,512], index: 6, kind: input, shape index: {}]
  %s7 = inlined_call_operand.hbm [shape: bf16[512,256], index: 7, kind: input, shape index: {}]
  %s8 = inlined_call_operand.hbm [shape: f32[1,256], index: 8, kind: input, shape index: {}]
  %s9 = inlined_call_operand.hbm [shape: bf16[256,128], index: 9, kind: input, shape index: {}]
  %s10 = inlined_call_operand.vmem [shape: f32[1,128], index: 10, kind: input, shape index: {}]
  %s11 = inlined_call_operand.vmem [shape: bf16[128,64], index: 11, kind: input, shape index: {}]
  %s12 = inlined_call_operand.vmem [shape: f32[1,64], index: 12, kind: input, shape index: {}]
  %s13 = inlined_call_operand.vmem [shape: bf16[64,4], index: 13, kind: input, shape index: {}]
  %s14 = inlined_call_operand.vmem [shape: f32[1,4], index: 14, kind: input, shape index: {}]
  %s15 = inlined_call_operand.vmem [shape: f32[8,4], index: 15, kind: output, shape index: {}]
  %s16 = sld [smem:[#allocation0]]
  $region106: #{tpu_custom_call.1} parent=0
    _
  %s18 = ssub.s32 1, %s16
  %s19 = scalar_select 0, %s18, %s16
  $region1: #{tpu_custom_call.1} parent=0
    #allocation2 [shape = 'u8[4096]{0}', space=vmem, size = 0x1000, scoped, tag = 'input window, operand 0, single buffered']
    #allocation3 [shape = 's32[1]{0}', space=sflag, size = 0x4, scoped, tag = 'scoped memory for tpu_custom_call.1']
    #allocation4 [shape = 'u8[18432]{0}', space=vmem, size = 0x4800, scoped, tag = 'input window, operand 1, single buffered']
    #allocation5 [shape = 's32[1]{0}', space=sflag, size = 0x4, scoped, tag = 'scoped memory for tpu_custom_call.1']
    #allocation6 [shape = 'u8[512]{0}', space=vmem, size = 0x400, scoped, tag = 'input window, operand 2, single buffered']
    #allocation7 [shape = 'u8[1024]{0}', space=vmem, size = 0x400, scoped, tag = 'input window, operand 4, single buffered']
    #allocation8 [shape = 's32[1]{0}', space=sflag, size = 0x4, scoped, tag = 'scoped memory for tpu_custom_call.1']
    #allocation9 [shape = 'u8[262144]{0}', space=vmem, size = 0x40000, scoped, tag = 'input window, operand 5, single buffered']
    #allocation10 [shape = 'u8[2048]{0}', space=vmem, size = 0x800, scoped, tag = 'input window, operand 6, single buffered']
    #allocation11 [shape = 's32[1]{0}', space=sflag, size = 0x4, scoped, tag = 'scoped memory for tpu_custom_call.1']
    #allocation12 [shape = 'u8[262144]{0}', space=vmem, size = 0x40000, scoped, tag = 'input window, operand 7, single buffered']
    #allocation13 [shape = 'u8[1024]{0}', space=vmem, size = 0x400, scoped, tag = 'input window, operand 8, single buffered']
    #allocation14 [shape = 's32[1]{0}', space=sflag, size = 0x4, scoped, tag = 'scoped memory for tpu_custom_call.1']
    #allocation15 [shape = 'u8[65536]{0}', space=vmem, size = 0x10000, scoped, tag = 'input window, operand 9, single buffered']
    %20 = vsyncpa [#allocation3], 0
    %21 = vsyncpa [#allocation5], 0
    %22 = vsyncpa [#allocation8], 0
    %23 = vsyncpa [#allocation11], 0
    %24 = vsyncpa [#allocation14], 0
    // Predicated region
    $region2: #{tpu_custom_call.1} parent=1 // pred_check
      _
    $region3: #{tpu_custom_call.1} parent=1 // pred_check_branch
      %26 = sbr.rel (0) target = $region5
    $region4: #{tpu_custom_call.1} parent=1 // pred_region
      %s28 = ssub.s32 128, 128
      %29 = vsyncadd [#allocation3], %s28
      %s31 = sshll.u32 [#allocation2], 4
      %s32 = int_to_ptr.vmem [resolvable:$true] %s31
      %34 = dma.hbm_to_vmem [thread:$0]  %s0, 128, %s32, [#allocation3]
    $region5: #{tpu_custom_call.1} parent=1 // pred_fallthru
      _
    // Predicated region
    $region6: #{tpu_custom_call.1} parent=1 // pred_check
      _
    $region7: #{tpu_custom_call.1} parent=1 // pred_check_branch
      %36 = sbr.rel (0) target = $region9
    $region8: #{tpu_custom_call.1} parent=1 // pred_region
      %s38 = ssub.s32 576, 576
      %39 = vsyncadd [#allocation5], %s38
      %s40 = sshll.u32 [#allocation4], 4
      %s41 = int_to_ptr.vmem [resolvable:$true] %s40
      %46 = dma.hbm_to_vmem [thread:$0]  %s1, 576, %s41, [#allocation5], 64, 64, 4
    $region9: #{tpu_custom_call.1} parent=1 // pred_fallthru
      _
    // Predicated region
    $region10: #{tpu_custom_call.1} parent=1 // pred_check
      _
    $region11: #{tpu_custom_call.1} parent=1 // pred_check_branch
      %48 = sbr.rel (0) target = $region13
    $region12: #{tpu_custom_call.1} parent=1 // pred_region
      %s50 = ssub.s32 16, 16
      %51 = vsyncadd [#allocation5], %s50
      %s53 = sshll.u32 [#allocation6], 4
      %s54 = int_to_ptr.vmem [resolvable:$true] %s53
      %56 = dma.hbm_to_vmem [thread:$0]  %s2, 16, %s54, [#allocation5]
    $region13: #{tpu_custom_call.1} parent=1 // pred_fallthru
      _
    // Predicated region
    $region14: #{tpu_custom_call.1} parent=1 // pred_check
      _
    $region15: #{tpu_custom_call.1} parent=1 // pred_check_branch
      %58 = sbr.rel (0) target = $region17
    $region16: #{tpu_custom_call.1} parent=1 // pred_region
      _
    $region17: #{tpu_custom_call.1} parent=1 // pred_fallthru
      _
    // Predicated region
    $region18: #{tpu_custom_call.1} parent=1 // pred_check
      _
    $region19: #{tpu_custom_call.1} parent=1 // pred_check_branch
      %60 = sbr.rel (0) target = $region21
    $region20: #{tpu_custom_call.1} parent=1 // pred_region
      %s62 = ssub.s32 32, 32
      %63 = vsyncadd [#allocation8], %s62
      %s65 = sshll.u32 [#allocation7], 4
      %s66 = int_to_ptr.vmem [resolvable:$true] %s65
      %68 = dma.hbm_to_vmem [thread:$0]  %s4, 32, %s66, [#allocation8]
    $region21: #{tpu_custom_call.1} parent=1 // pred_fallthru
      _
    // Predicated region
    $region22: #{tpu_custom_call.1} parent=1 // pred_check
      _
    $region23: #{tpu_custom_call.1} parent=1 // pred_check_branch
      %70 = sbr.rel (0) target = $region25
    $region24: #{tpu_custom_call.1} parent=1 // pred_region
      %s72 = ssub.s32 8192, 8192
      %73 = vsyncadd [#allocation8], %s72
      %s74 = sshll.u32 [#allocation9], 4
      %s75 = int_to_ptr.vmem [resolvable:$true] %s74
      %80 = dma.hbm_to_vmem [thread:$0]  %s5, 8192, %s75, [#allocation8], 256, 256, 16
    $region25: #{tpu_custom_call.1} parent=1 // pred_fallthru
      _
    // Predicated region
    $region26: #{tpu_custom_call.1} parent=1 // pred_check
      _
    $region27: #{tpu_custom_call.1} parent=1 // pred_check_branch
      %82 = sbr.rel (0) target = $region29
    $region28: #{tpu_custom_call.1} parent=1 // pred_region
      %s84 = ssub.s32 64, 64
      %85 = vsyncadd [#allocation11], %s84
      %s87 = sshll.u32 [#allocation10], 4
      %s88 = int_to_ptr.vmem [resolvable:$true] %s87
      %90 = dma.hbm_to_vmem [thread:$0]  %s6, 64, %s88, [#allocation11]
    $region29: #{tpu_custom_call.1} parent=1 // pred_fallthru
      _
    // Predicated region
    $region30: #{tpu_custom_call.1} parent=1 // pred_check
      _
    $region31: #{tpu_custom_call.1} parent=1 // pred_check_branch
      %92 = sbr.rel (0) target = $region33
    $region32: #{tpu_custom_call.1} parent=1 // pred_region
      %s94 = ssub.s32 8192, 8192
      %95 = vsyncadd [#allocation11], %s94
      %s96 = sshll.u32 [#allocation12], 4
      %s97 = int_to_ptr.vmem [resolvable:$true] %s96
      %102 = dma.hbm_to_vmem [thread:$0]  %s7, 8192, %s97, [#allocation11], 128, 128, 8
    $region33: #{tpu_custom_call.1} parent=1 // pred_fallthru
      _
    // Predicated region
    $region34: #{tpu_custom_call.1} parent=1 // pred_check
      _
    $region35: #{tpu_custom_call.1} parent=1 // pred_check_branch
      %104 = sbr.rel (0) target = $region37
    $region36: #{tpu_custom_call.1} parent=1 // pred_region
      %s106 = ssub.s32 32, 32
      %107 = vsyncadd [#allocation14], %s106
      %s109 = sshll.u32 [#allocation13], 4
      %s110 = int_to_ptr.vmem [resolvable:$true] %s109
      %112 = dma.hbm_to_vmem [thread:$0]  %s8, 32, %s110, [#allocation14]
    $region37: #{tpu_custom_call.1} parent=1 // pred_fallthru
      _
    // Predicated region
    $region38: #{tpu_custom_call.1} parent=1 // pred_check
      _
    $region39: #{tpu_custom_call.1} parent=1 // pred_check_branch
      %114 = sbr.rel (0) target = $region41
    $region40: #{tpu_custom_call.1} parent=1 // pred_region
      %s116 = ssub.s32 2048, 2048
      %117 = vsyncadd [#allocation14], %s116
      %s118 = sshll.u32 [#allocation15], 4
      %s119 = int_to_ptr.vmem [resolvable:$true] %s118
      %124 = dma.hbm_to_vmem [thread:$0]  %s9, 2048, %s119, [#allocation14], 64, 64, 4
    $region41: #{tpu_custom_call.1} parent=1 // pred_fallthru
      _
    // Predicated region
    $region42: #{tpu_custom_call.1} parent=1 // pred_check
      _
    $region43: #{tpu_custom_call.1} parent=1 // pred_check_branch
      %126 = sbr.rel (0) target = $region45
    $region44: #{tpu_custom_call.1} parent=1 // pred_region
      _
    $region45: #{tpu_custom_call.1} parent=1 // pred_fallthru
      _
    // Predicated region
    $region46: #{tpu_custom_call.1} parent=1 // pred_check
      _
    $region47: #{tpu_custom_call.1} parent=1 // pred_check_branch
      %128 = sbr.rel (0) target = $region49
    $region48: #{tpu_custom_call.1} parent=1 // pred_region
      _
    $region49: #{tpu_custom_call.1} parent=1 // pred_fallthru
      _
    // Predicated region
    $region50: #{tpu_custom_call.1} parent=1 // pred_check
      _
    $region51: #{tpu_custom_call.1} parent=1 // pred_check_branch
      %130 = sbr.rel (0) target = $region53
    $region52: #{tpu_custom_call.1} parent=1 // pred_region
      _
    $region53: #{tpu_custom_call.1} parent=1 // pred_fallthru
      _
    // Predicated region
    $region54: #{tpu_custom_call.1} parent=1 // pred_check
      _
    $region55: #{tpu_custom_call.1} parent=1 // pred_check_branch
      %132 = sbr.rel (0) target = $region57
    $region56: #{tpu_custom_call.1} parent=1 // pred_region
      _
    $region57: #{tpu_custom_call.1} parent=1 // pred_fallthru
      _
    // Predicated region
    $region58: #{tpu_custom_call.1} parent=1 // pred_check
      _
    $region59: #{tpu_custom_call.1} parent=1 // pred_check_branch
      %134 = sbr.rel (0) target = $region61
    $region60: #{tpu_custom_call.1} parent=1 // pred_region
      _
    $region61: #{tpu_custom_call.1} parent=1 // pred_fallthru
      _
    // Predicated region
    $region62: #{tpu_custom_call.1} parent=1 // pred_check
      _
    $region63: #{tpu_custom_call.1} parent=1 // pred_check_branch
      %136 = sbr.rel (0) target = $region65
    $region64: #{tpu_custom_call.1} parent=1 // pred_region
      %137 = dma.done [#allocation3], 128
    $region65: #{tpu_custom_call.1} parent=1 // pred_fallthru
      _
    // Predicated region
    $region66: #{tpu_custom_call.1} parent=1 // pred_check
      _
    $region67: #{tpu_custom_call.1} parent=1 // pred_check_branch
      %139 = sbr.rel (0) target = $region69
    $region68: #{tpu_custom_call.1} parent=1 // pred_region
      %140 = dma.done [#allocation5], 576
    $region69: #{tpu_custom_call.1} parent=1 // pred_fallthru
      _
    // Predicated region
    $region70: #{tpu_custom_call.1} parent=1 // pred_check
      _
    $region71: #{tpu_custom_call.1} parent=1 // pred_check_branch
      %142 = sbr.rel (0) target = $region73
    $region72: #{tpu_custom_call.1} parent=1 // pred_region
      %143 = dma.done [#allocation5], 16
    $region73: #{tpu_custom_call.1} parent=1 // pred_fallthru
      _
    // Predicated region
    $region74: #{tpu_custom_call.1} parent=1 // pred_check
      _
    $region75: #{tpu_custom_call.1} parent=1 // pred_check_branch
      %145 = sbr.rel (0) target = $region77
    $region76: #{tpu_custom_call.1} parent=1 // pred_region
      %146 = dma.done [#allocation8], 32
    $region77: #{tpu_custom_call.1} parent=1 // pred_fallthru
      _
    // Predicated region
    $region78: #{tpu_custom_call.1} parent=1 // pred_check
      _
    $region79: #{tpu_custom_call.1} parent=1 // pred_check_branch
      %148 = sbr.rel (0) target = $region81
    $region80: #{tpu_custom_call.1} parent=1 // pred_region
      %149 = dma.done [#allocation8], 8192
    $region81: #{tpu_custom_call.1} parent=1 // pred_fallthru
      _
    // Predicated region
    $region82: #{tpu_custom_call.1} parent=1 // pred_check
      _
    $region83: #{tpu_custom_call.1} parent=1 // pred_check_branch
      %151 = sbr.rel (0) target = $region85
    $region84: #{tpu_custom_call.1} parent=1 // pred_region
      %152 = dma.done [#allocation11], 64
    $region85: #{tpu_custom_call.1} parent=1 // pred_fallthru
      _
    // Predicated region
    $region86: #{tpu_custom_call.1} parent=1 // pred_check
      _
    $region87: #{tpu_custom_call.1} parent=1 // pred_check_branch
      %154 = sbr.rel (0) target = $region89
    $region88: #{tpu_custom_call.1} parent=1 // pred_region
      %155 = dma.done [#allocation11], 8192
    $region89: #{tpu_custom_call.1} parent=1 // pred_fallthru
      _
    // Predicated region
    $region90: #{tpu_custom_call.1} parent=1 // pred_check
      _
    $region91: #{tpu_custom_call.1} parent=1 // pred_check_branch
      %157 = sbr.rel (0) target = $region93
    $region92: #{tpu_custom_call.1} parent=1 // pred_region
      %158 = dma.done [#allocation14], 32
    $region93: #{tpu_custom_call.1} parent=1 // pred_fallthru
      _
    // Predicated region
    $region94: #{tpu_custom_call.1} parent=1 // pred_check
      _
    $region95: #{tpu_custom_call.1} parent=1 // pred_check_branch
      %160 = sbr.rel (0) target = $region97
    $region96: #{tpu_custom_call.1} parent=1 // pred_region
      %161 = dma.done [#allocation14], 2048
    $region97: #{tpu_custom_call.1} parent=1 // pred_fallthru
      _
    %v163 = vld [vmem:[#allocation2] sm:$0xff]
    %v164 = vpack.c.bf16 %v163, %v163
    %v165 = vld [vmem:[#allocation4] sm:$0xf]
    %v166 = vld [vmem:[#allocation4 + $0x4] sm:$0xf]
    %v167 = vld [vmem:[#allocation4 + $0x8] sm:$0xf]
    %v168 = vld [vmem:[#allocation4 + $0xc] sm:$0xf]
    %v169 = vld [vmem:[#allocation4 + $0x10] sm:$0xf]
    %v170 = vld [vmem:[#allocation4 + $0x14] sm:$0xf]
    %v171 = vld [vmem:[#allocation4 + $0x18] sm:$0xf]
    %v172 = vld [vmem:[#allocation4 + $0x1c] sm:$0xf]
    %v173 = vld [vmem:[#allocation4 + $0x20] sm:$0xf]
    %v174 = vld [vmem:[#allocation6] sm:$0x1]
    %v176 = vlaneseq
    %v177 = vshrl.u32 %v176, 7
    %v178 = vsub.s32 0, %v177
    %v179 = vrot.slane %v174, %v178
    %v190 = vunpack.c.l.b16 %v165
    %v191 = vunpack.c.l.b16 %v166
    %v192 = vunpack.c.l.b16 %v167
    %v193 = vunpack.c.l.b16 %v168
    %v194 = vunpack.c.l.b16 %v169
    %v195 = vunpack.c.l.b16 %v170
    %v196 = vunpack.c.l.b16 %v171
    %v197 = vunpack.c.l.b16 %v172
    %v198 = vunpack.c.l.b16 %v173
    %v199 = vpack.c.b16 %v191, %v190
    %v200 = vpack.c.b16 %v193, %v192
    %v201 = vpack.c.b16 %v195, %v194
    %v202 = vpack.c.b16 %v197, %v196
    %v203 = vpack.c.b16 %v198, %v198
    %vm208 = vcmask 588800
    %v210 = vsel %vm208, %v164, 0
    %vm212 = vcmask 1043456
    %v214 = vsel %vm212, %v203, 0
    %216 = vmatprep.subr.bf16.mxu0 0
    %217 = vmatpush1.bf16.msra.mxu0 %v199
    %218 = vmatprep.subr.bf16.mxu0 0
    %219 = vmatpush1.bf16.msra.mxu0 %v200
    %220 = vmatprep.subr.bf16.mxu0 0
    %221 = vmatpush1.bf16.msra.mxu0 %v201
    %222 = vmatprep.subr.bf16.mxu0 0
    %223 = vmatpush1.bf16.msra.mxu0 %v202
    %224 = vmatprep.subr.bf16.mxu0 0
    %225 = vmatpush1.bf16.msra.mxu0 %v214
    %226 = vmatprep.subr.bf16.mxu0 0
    %227 = vmatpush1.bf16.msra.mxu0 0
    %228 = vmatprep.subr.bf16.mxu0 0
    %229 = vmatpush1.bf16.msra.mxu0 0
    %230 = vmatprep.subr.bf16.mxu0 0
    %231 = vmatpush1.bf16.msra.mxu0 0
    %232 = vmatprep.subr.bf16.mxu0 0
    %233 = vmatpush1.bf16.msra.mxu0 0
    %234 = vmatprep.subr.bf16.mxu0 0
    %235 = vmatpush1.bf16.msra.mxu0 0
    %236 = vmatprep.subr.bf16.mxu0 0
    %237 = vmatpush1.bf16.msra.mxu0 0
    %238 = vmatprep.subr.bf16.mxu0 0
    %239 = vmatpush1.bf16.msra.mxu0 0
    %240 = vmatprep.subr.bf16.mxu0 0
    %241 = vmatpush1.bf16.msra.mxu0 0
    %242 = vmatprep.subr.bf16.mxu0 0
    %243 = vmatpush1.bf16.msra.mxu0 0
    %244 = vmatprep.subr.bf16.mxu0 0
    %245 = vmatpush1.bf16.msra.mxu0 0
    %246 = vmatprep.subr.bf16.mxu0 0
    %247 = vmatpush1.bf16.msra.mxu0 0
    %248 = vmatprep.mubr.bf16.mxu0 0
    %249 = vmatmul.mubr.bf16.gmra.mrb[0].mxu0 %v210
    %v250 = vpop.f32.mrb[0].mxu0
    %v251 = vadd.f32 %v179, %v250
    %v252 = vpop.f32.mrb[0].mxu0
    %v253 = vpop.f32.mrb[0].mxu0
    %v254 = vpop.f32.mrb[0].mxu0
    %255 = vdwg.mxu0
    %v256 = vmax.f32 %v251, 0.0
    %v257 = vpack.c.bf16 %v256, %v256
    %v258 = vld [vmem:[%s3] sm:$0xff]
    %v259 = vld [vmem:[%s3 + $0x8] sm:$0xff]
    %v260 = vld [vmem:[%s3 + $0x10] sm:$0xff]
    %v261 = vld [vmem:[%s3 + $0x18] sm:$0xff]
    %v262 = vld [vmem:[%s3 + $0x20] sm:$0xff]
    %v263 = vld [vmem:[%s3 + $0x28] sm:$0xff]
    %v264 = vld [vmem:[%s3 + $0x30] sm:$0xff]
    %v265 = vld [vmem:[%s3 + $0x38] sm:$0xff]
    %v266 = vld [vmem:[%s3 + $0x40] sm:$0xff]
    %v267 = vld [vmem:[%s3 + $0x48] sm:$0xff]
    %v268 = vld [vmem:[%s3 + $0x50] sm:$0xff]
    %v269 = vld [vmem:[%s3 + $0x58] sm:$0xff]
    %v270 = vld [vmem:[%s3 + $0x60] sm:$0xff]
    %v271 = vld [vmem:[%s3 + $0x68] sm:$0xff]
    %v272 = vld [vmem:[%s3 + $0x70] sm:$0xff]
    %v273 = vld [vmem:[%s3 + $0x78] sm:$0xff]
    %v274 = vld [vmem:[#allocation7] sm:$0x3]
    %v276 = vlaneseq
    %v277 = vshrl.u32 %v276, 7
    %v278 = vsub.s32 0, %v277
    %v279 = vrot.slane %v274, %v278
    %v280 = vlaneseq
    %v281 = vshrl.u32 %v280, 7
    %v282 = vsub.s32 1, %v281
    %v283 = vrot.slane %v274, %v282
    %v302 = vunpack.c.l.b16 %v258
    %v303 = vunpack.c.h.b16 %v258
    %v304 = vunpack.c.l.b16 %v259
    %v305 = vunpack.c.h.b16 %v259
    %v306 = vunpack.c.l.b16 %v260
    %v307 = vunpack.c.h.b16 %v260
    %v308 = vunpack.c.l.b16 %v261
    %v309 = vunpack.c.h.b16 %v261
    %v310 = vunpack.c.l.b16 %v262
    %v311 = vunpack.c.h.b16 %v262
    %v312 = vunpack.c.l.b16 %v263
    %v313 = vunpack.c.h.b16 %v263
    %v314 = vunpack.c.l.b16 %v264
    %v315 = vunpack.c.h.b16 %v264
    %v316 = vunpack.c.l.b16 %v265
    %v317 = vunpack.c.h.b16 %v265
    %v318 = vunpack.c.l.b16 %v266
    %v319 = vunpack.c.h.b16 %v266
    %v320 = vunpack.c.l.b16 %v267
    %v321 = vunpack.c.h.b16 %v267
    %v322 = vunpack.c.l.b16 %v268
    %v323 = vunpack.c.h.b16 %v268
    %v324 = vunpack.c.l.b16 %v269
    %v325 = vunpack.c.h.b16 %v269
    %v326 = vunpack.c.l.b16 %v270
    %v327 = vunpack.c.h.b16 %v270
    %v328 = vunpack.c.l.b16 %v271
    %v329 = vunpack.c.h.b16 %v271
    %v330 = vunpack.c.l.b16 %v272
    %v331 = vunpack.c.h.b16 %v272
    %v332 = vunpack.c.l.b16 %v273
    %v333 = vunpack.c.h.b16 %v273
    %v334 = vpack.c.b16 %v304, %v302
    %v335 = vpack.c.b16 %v305, %v303
    %v336 = vpack.c.b16 %v308, %v306
    %v337 = vpack.c.b16 %v309, %v307
    %v338 = vpack.c.b16 %v312, %v310
    %v339 = vpack.c.b16 %v313, %v311
    %v340 = vpack.c.b16 %v316, %v314
    %v341 = vpack.c.b16 %v317, %v315
    %v342 = vpack.c.b16 %v320, %v318
    %v343 = vpack.c.b16 %v321, %v319
    %v344 = vpack.c.b16 %v324, %v322
    %v345 = vpack.c.b16 %v325, %v323
    %v346 = vpack.c.b16 %v328, %v326
    %v347 = vpack.c.b16 %v329, %v327
    %v348 = vpack.c.b16 %v332, %v330
    %v349 = vpack.c.b16 %v333, %v331
    %366 = vmatprep.subr.bf16.mxu0 %v335
    %367 = vmatpush1.bf16.msra.mxu0 %v334
    %368 = vmatprep.subr.bf16.mxu0 %v337
    %369 = vmatpush1.bf16.msra.mxu0 %v336
    %370 = vmatprep.subr.bf16.mxu0 %v339
    %371 = vmatpush1.bf16.msra.mxu0 %v338
    %372 = vmatprep.subr.bf16.mxu0 %v341
    %373 = vmatpush1.bf16.msra.mxu0 %v340
    %374 = vmatprep.subr.bf16.mxu0 %v343
    %375 = vmatpush1.bf16.msra.mxu0 %v342
    %376 = vmatprep.subr.bf16.mxu0 %v345
    %377 = vmatpush1.bf16.msra.mxu0 %v344
    %378 = vmatprep.subr.bf16.mxu0 %v347
    %379 = vmatpush1.bf16.msra.mxu0 %v346
    %380 = vmatprep.subr.bf16.mxu0 %v349
    %381 = vmatpush1.bf16.msra.mxu0 %v348
    %382 = vmatprep.subr.bf16.mxu0 0
    %383 = vmatpush1.bf16.msra.mxu0 0
    %384 = vmatprep.subr.bf16.mxu0 0
    %385 = vmatpush1.bf16.msra.mxu0 0
    %386 = vmatprep.subr.bf16.mxu0 0
    %387 = vmatpush1.bf16.msra.mxu0 0
    %388 = vmatprep.subr.bf16.mxu0 0
    %389 = vmatpush1.bf16.msra.mxu0 0
    %390 = vmatprep.subr.bf16.mxu0 0
    %391 = vmatpush1.bf16.msra.mxu0 0
    %392 = vmatprep.subr.bf16.mxu0 0
    %393 = vmatpush1.bf16.msra.mxu0 0
    %394 = vmatprep.subr.bf16.mxu0 0
    %395 = vmatpush1.bf16.msra.mxu0 0
    %396 = vmatprep.subr.bf16.mxu0 0
    %397 = vmatpush1.bf16.msra.mxu0 0
    %398 = vmatprep.mubr.bf16.mxu0 0
    %399 = vmatmul.mubr.bf16.gmra.mrb[0].mxu0 %v257
    %v400 = vpop.f32.mrb[0].mxu0
    %v401 = vadd.f32 %v279, %v400
    %v402 = vpop.f32.mrb[0].mxu0
    %v403 = vadd.f32 %v283, %v402
    %v404 = vpop.f32.mrb[0].mxu0
    %v405 = vpop.f32.mrb[0].mxu0
    %406 = vdwg.mxu0
    %v407 = vmax.f32 %v401, 0.0
    %v408 = vmax.f32 %v403, 0.0
    %v409 = vpack.c.bf16 %v407, %v407
    %v410 = vpack.c.bf16 %v408, %v408
    %v411 = vld [vmem:[#allocation9] sm:$0xff]
    %v412 = vld [vmem:[#allocation9 + $0x8] sm:$0xff]
    %v413 = vld [vmem:[#allocation9 + $0x10] sm:$0xff]
    %v414 = vld [vmem:[#allocation9 + $0x18] sm:$0xff]
    %v415 = vld [vmem:[#allocation9 + $0x20] sm:$0xff]
    %v416 = vld [vmem:[#allocation9 + $0x28] sm:$0xff]
    %v417 = vld [vmem:[#allocation9 + $0x30] sm:$0xff]
    %v418 = vld [vmem:[#allocation9 + $0x38] sm:$0xff]
    %v419 = vld [vmem:[#allocation9 + $0x40] sm:$0xff]
    %v420 = vld [vmem:[#allocation9 + $0x48] sm:$0xff]
    %v421 = vld [vmem:[#allocation9 + $0x50] sm:$0xff]
    %v422 = vld [vmem:[#allocation9 + $0x58] sm:$0xff]
    %v423 = vld [vmem:[#allocation9 + $0x60] sm:$0xff]
    %v424 = vld [vmem:[#allocation9 + $0x68] sm:$0xff]
    %v425 = vld [vmem:[#allocation9 + $0x70] sm:$0xff]
    %v426 = vld [vmem:[#allocation9 + $0x78] sm:$0xff]
    %v427 = vld [vmem:[#allocation9 + $0x80] sm:$0xff]
    %v428 = vld [vmem:[#allocation9 + $0x88] sm:$0xff]
    %v429 = vld [vmem:[#allocation9 + $0x90] sm:$0xff]
    %v430 = vld [vmem:[#allocation9 + $0x98] sm:$0xff]
    %v431 = vld [vmem:[#allocation9 + $0xa0] sm:$0xff]
    %v432 = vld [vmem:[#allocation9 + $0xa8] sm:$0xff]
    %v433 = vld [vmem:[#allocation9 + $0xb0] sm:$0xff]
    %v434 = vld [vmem:[#allocation9 + $0xb8] sm:$0xff]
    %v435 = vld [vmem:[#allocation9 + $0xc0] sm:$0xff]
    %v436 = vld [vmem:[#allocation9 + $0xc8] sm:$0xff]
    %v437 = vld [vmem:[#allocation9 + $0xd0] sm:$0xff]
    %v438 = vld [vmem:[#allocation9 + $0xd8] sm:$0xff]
    %v439 = vld [vmem:[#allocation9 + $0xe0] sm:$0xff]
    %v440 = vld [vmem:[#allocation9 + $0xe8] sm:$0xff]
    %v441 = vld [vmem:[#allocation9 + $0xf0] sm:$0xff]
    %v442 = vld [vmem:[#allocation9 + $0xf8] sm:$0xff]
    %v443 = vld [vmem:[#allocation9 + $0x100] sm:$0xff]
    %v444 = vld [vmem:[#allocation9 + $0x108] sm:$0xff]
    %v445 = vld [vmem:[#allocation9 + $0x110] sm:$0xff]
    %v446 = vld [vmem:[#allocation9 + $0x118] sm:$0xff]
    %v447 = vld [vmem:[#allocation9 + $0x120] sm:$0xff]
    %v448 = vld [vmem:[#allocation9 + $0x128] sm:$0xff]
    %v449 = vld [vmem:[#allocation9 + $0x130] sm:$0xff]
    %v450 = vld [vmem:[#allocation9 + $0x138] sm:$0xff]
    %v451 = vld [vmem:[#allocation9 + $0x140] sm:$0xff]
    %v452 = vld [vmem:[#allocation9 + $0x148] sm:$0xff]
    %v453 = vld [vmem:[#allocation9 + $0x150] sm:$0xff]
    %v454 = vld [vmem:[#allocation9 + $0x158] sm:$0xff]
    %v455 = vld [vmem:[#allocation9 + $0x160] sm:$0xff]
    %v456 = vld [vmem:[#allocation9 + $0x168] sm:$0xff]
    %v457 = vld [vmem:[#allocation9 + $0x170] sm:$0xff]
    %v458 = vld [vmem:[#allocation9 + $0x178] sm:$0xff]
    %v459 = vld [vmem:[#allocation9 + $0x180] sm:$0xff]
    %v460 = vld [vmem:[#allocation9 + $0x188] sm:$0xff]
    %v461 = vld [vmem:[#allocation9 + $0x190] sm:$0xff]
    %v462 = vld [vmem:[#allocation9 + $0x198] sm:$0xff]
    %v463 = vld [vmem:[#allocation9 + $0x1a0] sm:$0xff]
    %v464 = vld [vmem:[#allocation9 + $0x1a8] sm:$0xff]
    %v465 = vld [vmem:[#allocation9 + $0x1b0] sm:$0xff]
    %v466 = vld [vmem:[#allocation9 + $0x1b8] sm:$0xff]
    %v467 = vld [vmem:[#allocation9 + $0x1c0] sm:$0xff]
    %v468 = vld [vmem:[#allocation9 + $0x1c8] sm:$0xff]
    %v469 = vld [vmem:[#allocation9 + $0x1d0] sm:$0xff]
    %v470 = vld [vmem:[#allocation9 + $0x1d8] sm:$0xff]
    %v471 = vld [vmem:[#allocation9 + $0x1e0] sm:$0xff]
    %v472 = vld [vmem:[#allocation9 + $0x1e8] sm:$0xff]
    %v473 = vld [vmem:[#allocation9 + $0x1f0] sm:$0xff]
    %v474 = vld [vmem:[#allocation9 + $0x1f8] sm:$0xff]
    %v475 = vld [vmem:[#allocation10] sm:$0xf]
    %v477 = vlaneseq
    %v478 = vshrl.u32 %v477, 7
    %v479 = vsub.s32 0, %v478
    %v480 = vrot.slane %v475, %v479
    %v481 = vlaneseq
    %v482 = vshrl.u32 %v481, 7
    %v483 = vsub.s32 1, %v482
    %v484 = vrot.slane %v475, %v483
    %v485 = vlaneseq
    %v486 = vshrl.u32 %v485, 7
    %v487 = vsub.s32 2, %v486
    %v488 = vrot.slane %v475, %v487
    %v489 = vlaneseq
    %v490 = vshrl.u32 %v489, 7
    %v491 = vsub.s32 3, %v490
    %v492 = vrot.slane %v475, %v491
    %v561 = vunpack.c.l.b16 %v411
    %v562 = vunpack.c.h.b16 %v411
    %v563 = vunpack.c.l.b16 %v412
    %v564 = vunpack.c.h.b16 %v412
    %v565 = vunpack.c.l.b16 %v413
    %v566 = vunpack.c.h.b16 %v413
    %v567 = vunpack.c.l.b16 %v414
    %v568 = vunpack.c.h.b16 %v414
    %v569 = vunpack.c.l.b16 %v415
    %v570 = vunpack.c.h.b16 %v415
    %v571 = vunpack.c.l.b16 %v416
    %v572 = vunpack.c.h.b16 %v416
    %v573 = vunpack.c.l.b16 %v417
    %v574 = vunpack.c.h.b16 %v417
    %v575 = vunpack.c.l.b16 %v418
    %v576 = vunpack.c.h.b16 %v418
    %v577 = vunpack.c.l.b16 %v419
    %v578 = vunpack.c.h.b16 %v419
    %v579 = vunpack.c.l.b16 %v420
    %v580 = vunpack.c.h.b16 %v420
    %v581 = vunpack.c.l.b16 %v421
    %v582 = vunpack.c.h.b16 %v421
    %v583 = vunpack.c.l.b16 %v422
    %v584 = vunpack.c.h.b16 %v422
    %v585 = vunpack.c.l.b16 %v423
    %v586 = vunpack.c.h.b16 %v423
    %v587 = vunpack.c.l.b16 %v424
    %v588 = vunpack.c.h.b16 %v424
    %v589 = vunpack.c.l.b16 %v425
    %v590 = vunpack.c.h.b16 %v425
    %v591 = vunpack.c.l.b16 %v426
    %v592 = vunpack.c.h.b16 %v426
    %v593 = vunpack.c.l.b16 %v427
    %v594 = vunpack.c.h.b16 %v427
    %v595 = vunpack.c.l.b16 %v428
    %v596 = vunpack.c.h.b16 %v428
    %v597 = vunpack.c.l.b16 %v429
    %v598 = vunpack.c.h.b16 %v429
    %v599 = vunpack.c.l.b16 %v430
    %v600 = vunpack.c.h.b16 %v430
    %v601 = vunpack.c.l.b16 %v431
    %v602 = vunpack.c.h.b16 %v431
    %v603 = vunpack.c.l.b16 %v432
    %v604 = vunpack.c.h.b16 %v432
    %v605 = vunpack.c.l.b16 %v433
    %v606 = vunpack.c.h.b16 %v433
    %v607 = vunpack.c.l.b16 %v434
    %v608 = vunpack.c.h.b16 %v434
    %v609 = vunpack.c.l.b16 %v435
    %v610 = vunpack.c.h.b16 %v435
    %v611 = vunpack.c.l.b16 %v436
    %v612 = vunpack.c.h.b16 %v436
    %v613 = vunpack.c.l.b16 %v437
    %v614 = vunpack.c.h.b16 %v437
    %v615 = vunpack.c.l.b16 %v438
    %v616 = vunpack.c.h.b16 %v438
    %v617 = vunpack.c.l.b16 %v439
    %v618 = vunpack.c.h.b16 %v439
    %v619 = vunpack.c.l.b16 %v440
    %v620 = vunpack.c.h.b16 %v440
    %v621 = vunpack.c.l.b16 %v441
    %v622 = vunpack.c.h.b16 %v441
    %v623 = vunpack.c.l.b16 %v442
    %v624 = vunpack.c.h.b16 %v442
    %v625 = vunpack.c.l.b16 %v443
    %v626 = vunpack.c.h.b16 %v443
    %v627 = vunpack.c.l.b16 %v444
    %v628 = vunpack.c.h.b16 %v444
    %v629 = vunpack.c.l.b16 %v445
    %v630 = vunpack.c.h.b16 %v445
    %v631 = vunpack.c.l.b16 %v446
    %v632 = vunpack.c.h.b16 %v446
    %v633 = vunpack.c.l.b16 %v447
    %v634 = vunpack.c.h.b16 %v447
    %v635 = vunpack.c.l.b16 %v448
    %v636 = vunpack.c.h.b16 %v448
    %v637 = vunpack.c.l.b16 %v449
    %v638 = vunpack.c.h.b16 %v449
    %v639 = vunpack.c.l.b16 %v450
    %v640 = vunpack.c.h.b16 %v450
    %v641 = vunpack.c.l.b16 %v451
    %v642 = vunpack.c.h.b16 %v451
    %v643 = vunpack.c.l.b16 %v452
    %v644 = vunpack.c.h.b16 %v452
    %v645 = vunpack.c.l.b16 %v453
    %v646 = vunpack.c.h.b16 %v453
    %v647 = vunpack.c.l.b16 %v454
    %v648 = vunpack.c.h.b16 %v454
    %v649 = vunpack.c.l.b16 %v455
    %v650 = vunpack.c.h.b16 %v455
    %v651 = vunpack.c.l.b16 %v456
    %v652 = vunpack.c.h.b16 %v456
    %v653 = vunpack.c.l.b16 %v457
    %v654 = vunpack.c.h.b16 %v457
    %v655 = vunpack.c.l.b16 %v458
    %v656 = vunpack.c.h.b16 %v458
    %v657 = vunpack.c.l.b16 %v459
    %v658 = vunpack.c.h.b16 %v459
    %v659 = vunpack.c.l.b16 %v460
    %v660 = vunpack.c.h.b16 %v460
    %v661 = vunpack.c.l.b16 %v461
    %v662 = vunpack.c.h.b16 %v461
    %v663 = vunpack.c.l.b16 %v462
    %v664 = vunpack.c.h.b16 %v462
    %v665 = vunpack.c.l.b16 %v463
    %v666 = vunpack.c.h.b16 %v463
    %v667 = vunpack.c.l.b16 %v464
    %v668 = vunpack.c.h.b16 %v464
    %v669 = vunpack.c.l.b16 %v465
    %v670 = vunpack.c.h.b16 %v465
    %v671 = vunpack.c.l.b16 %v466
    %v672 = vunpack.c.h.b16 %v466
    %v673 = vunpack.c.l.b16 %v467
    %v674 = vunpack.c.h.b16 %v467
    %v675 = vunpack.c.l.b16 %v468
    %v676 = vunpack.c.h.b16 %v468
    %v677 = vunpack.c.l.b16 %v469
    %v678 = vunpack.c.h.b16 %v469
    %v679 = vunpack.c.l.b16 %v470
    %v680 = vunpack.c.h.b16 %v470
    %v681 = vunpack.c.l.b16 %v471
    %v682 = vunpack.c.h.b16 %v471
    %v683 = vunpack.c.l.b16 %v472
    %v684 = vunpack.c.h.b16 %v472
    %v685 = vunpack.c.l.b16 %v473
    %v686 = vunpack.c.h.b16 %v473
    %v687 = vunpack.c.l.b16 %v474
    %v688 = vunpack.c.h.b16 %v474
    %v689 = vpack.c.b16 %v565, %v561
    %v690 = vpack.c.b16 %v566, %v562
    %v691 = vpack.c.b16 %v567, %v563
    %v692 = vpack.c.b16 %v568, %v564
    %v693 = vpack.c.b16 %v573, %v569
    %v694 = vpack.c.b16 %v574, %v570
    %v695 = vpack.c.b16 %v575, %v571
    %v696 = vpack.c.b16 %v576, %v572
    %v697 = vpack.c.b16 %v581, %v577
    %v698 = vpack.c.b16 %v582, %v578
    %v699 = vpack.c.b16 %v583, %v579
    %v700 = vpack.c.b16 %v584, %v580
    %v701 = vpack.c.b16 %v589, %v585
    %v702 = vpack.c.b16 %v590, %v586
    %v703 = vpack.c.b16 %v591, %v587
    %v704 = vpack.c.b16 %v592, %v588
    %v705 = vpack.c.b16 %v597, %v593
    %v706 = vpack.c.b16 %v598, %v594
    %v707 = vpack.c.b16 %v599, %v595
    %v708 = vpack.c.b16 %v600, %v596
    %v709 = vpack.c.b16 %v605, %v601
    %v710 = vpack.c.b16 %v606, %v602
    %v711 = vpack.c.b16 %v607, %v603
    %v712 = vpack.c.b16 %v608, %v604
    %v713 = vpack.c.b16 %v613, %v609
    %v714 = vpack.c.b16 %v614, %v610
    %v715 = vpack.c.b16 %v615, %v611
    %v716 = vpack.c.b16 %v616, %v612
    %v717 = vpack.c.b16 %v621, %v617
    %v718 = vpack.c.b16 %v622, %v618
    %v719 = vpack.c.b16 %v623, %v619
    %v720 = vpack.c.b16 %v624, %v620
    %v721 = vpack.c.b16 %v629, %v625
    %v722 = vpack.c.b16 %v630, %v626
    %v723 = vpack.c.b16 %v631, %v627
    %v724 = vpack.c.b16 %v632, %v628
    %v725 = vpack.c.b16 %v637, %v633
    %v726 = vpack.c.b16 %v638, %v634
    %v727 = vpack.c.b16 %v639, %v635
    %v728 = vpack.c.b16 %v640, %v636
    %v729 = vpack.c.b16 %v645, %v641
    %v730 = vpack.c.b16 %v646, %v642
    %v731 = vpack.c.b16 %v647, %v643
    %v732 = vpack.c.b16 %v648, %v644
    %v733 = vpack.c.b16 %v653, %v649
    %v734 = vpack.c.b16 %v654, %v650
    %v735 = vpack.c.b16 %v655, %v651
    %v736 = vpack.c.b16 %v656, %v652
    %v737 = vpack.c.b16 %v661, %v657
    %v738 = vpack.c.b16 %v662, %v658
    %v739 = vpack.c.b16 %v663, %v659
    %v740 = vpack.c.b16 %v664, %v660
    %v741 = vpack.c.b16 %v669, %v665
    %v742 = vpack.c.b16 %v670, %v666
    %v743 = vpack.c.b16 %v671, %v667
    %v744 = vpack.c.b16 %v672, %v668
    %v745 = vpack.c.b16 %v677, %v673
    %v746 = vpack.c.b16 %v678, %v674
    %v747 = vpack.c.b16 %v679, %v675
    %v748 = vpack.c.b16 %v680, %v676
    %v749 = vpack.c.b16 %v685, %v681
    %v750 = vpack.c.b16 %v686, %v682
    %v751 = vpack.c.b16 %v687, %v683
    %v752 = vpack.c.b16 %v688, %v684
    %817 = vmatprep.subr.bf16.mxu0 %v690
    %818 = vmatpush1.bf16.msra.mxu0 %v689
    %819 = vmatprep.subr.bf16.mxu0 %v694
    %820 = vmatpush1.bf16.msra.mxu0 %v693
    %821 = vmatprep.subr.bf16.mxu0 %v698
    %822 = vmatpush1.bf16.msra.mxu0 %v697
    %823 = vmatprep.subr.bf16.mxu0 %v702
    %824 = vmatpush1.bf16.msra.mxu0 %v701
    %825 = vmatprep.subr.bf16.mxu0 %v706
    %826 = vmatpush1.bf16.msra.mxu0 %v705
    %827 = vmatprep.subr.bf16.mxu0 %v710
    %828 = vmatpush1.bf16.msra.mxu0 %v709
    %829 = vmatprep.subr.bf16.mxu0 %v714
    %830 = vmatpush1.bf16.msra.mxu0 %v713
    %831 = vmatprep.subr.bf16.mxu0 %v718
    %832 = vmatpush1.bf16.msra.mxu0 %v717
    %833 = vmatprep.subr.bf16.mxu0 %v722
    %834 = vmatpush1.bf16.msra.mxu0 %v721
    %835 = vmatprep.subr.bf16.mxu0 %v726
    %836 = vmatpush1.bf16.msra.mxu0 %v725
    %837 = vmatprep.subr.bf16.mxu0 %v730
    %838 = vmatpush1.bf16.msra.mxu0 %v729
    %839 = vmatprep.subr.bf16.mxu0 %v734
    %840 = vmatpush1.bf16.msra.mxu0 %v733
    %841 = vmatprep.subr.bf16.mxu0 %v738
    %842 = vmatpush1.bf16.msra.mxu0 %v737
    %843 = vmatprep.subr.bf16.mxu0 %v742
    %844 = vmatpush1.bf16.msra.mxu0 %v741
    %845 = vmatprep.subr.bf16.mxu0 %v746
    %846 = vmatpush1.bf16.msra.mxu0 %v745
    %847 = vmatprep.subr.bf16.mxu0 %v750
    %848 = vmatpush1.bf16.msra.mxu0 %v749
    %849 = vmatprep.mubr.bf16.mxu0 %v410
    %850 = vmatmul.mubr.bf16.gmra.mrb[0].mxu0 %v409
    %v851 = vpop.f32.mrb[0].mxu0
    %v852 = vadd.f32 %v480, %v851
    %v853 = vpop.f32.mrb[0].mxu0
    %v854 = vadd.f32 %v484, %v853
    %v855 = vpop.f32.mrb[0].mxu0
    %v856 = vpop.f32.mrb[0].mxu0
    %857 = vdwg.mxu0
    %858 = vmatprep.subr.bf16.mxu0 %v692
    %859 = vmatpush1.bf16.msra.mxu0 %v691
    %860 = vmatprep.subr.bf16.mxu0 %v696
    %861 = vmatpush1.bf16.msra.mxu0 %v695
    %862 = vmatprep.subr.bf16.mxu0 %v700
    %863 = vmatpush1.bf16.msra.mxu0 %v699
    %864 = vmatprep.subr.bf16.mxu0 %v704
    %865 = vmatpush1.bf16.msra.mxu0 %v703
    %866 = vmatprep.subr.bf16.mxu0 %v708
    %867 = vmatpush1.bf16.msra.mxu0 %v707
    %868 = vmatprep.subr.bf16.mxu0 %v712
    %869 = vmatpush1.bf16.msra.mxu0 %v711
    %870 = vmatprep.subr.bf16.mxu0 %v716
    %871 = vmatpush1.bf16.msra.mxu0 %v715
    %872 = vmatprep.subr.bf16.mxu0 %v720
    %873 = vmatpush1.bf16.msra.mxu0 %v719
    %874 = vmatprep.subr.bf16.mxu0 %v724
    %875 = vmatpush1.bf16.msra.mxu0 %v723
    %876 = vmatprep.subr.bf16.mxu0 %v728
    %877 = vmatpush1.bf16.msra.mxu0 %v727
    %878 = vmatprep.subr.bf16.mxu0 %v732
    %879 = vmatpush1.bf16.msra.mxu0 %v731
    %880 = vmatprep.subr.bf16.mxu0 %v736
    %881 = vmatpush1.bf16.msra.mxu0 %v735
    %882 = vmatprep.subr.bf16.mxu0 %v740
    %883 = vmatpush1.bf16.msra.mxu0 %v739
    %884 = vmatprep.subr.bf16.mxu0 %v744
    %885 = vmatpush1.bf16.msra.mxu0 %v743
    %886 = vmatprep.subr.bf16.mxu0 %v748
    %887 = vmatpush1.bf16.msra.mxu0 %v747
    %888 = vmatprep.subr.bf16.mxu0 %v752
    %889 = vmatpush1.bf16.msra.mxu0 %v751
    %890 = vmatprep.mubr.bf16.mxu0 %v410
    %891 = vmatmul.mubr.bf16.gmra.mrb[0].mxu0 %v409
    %v892 = vpop.f32.mrb[0].mxu0
    %v893 = vadd.f32 %v488, %v892
    %v894 = vpop.f32.mrb[0].mxu0
    %v895 = vadd.f32 %v492, %v894
    %v896 = vpop.f32.mrb[0].mxu0
    %v897 = vpop.f32.mrb[0].mxu0
    %898 = vdwg.mxu0
    %v899 = vmax.f32 %v852, 0.0
    %v900 = vmax.f32 %v854, 0.0
    %v901 = vmax.f32 %v893, 0.0
    %v902 = vmax.f32 %v895, 0.0
    %v903 = vpack.c.bf16 %v899, %v899
    %v904 = vpack.c.bf16 %v900, %v900
    %v905 = vpack.c.bf16 %v901, %v901
    %v906 = vpack.c.bf16 %v902, %v902
    %v907 = vld [vmem:[#allocation12] sm:$0xff]
    %v908 = vld [vmem:[#allocation12 + $0x8] sm:$0xff]
    %v909 = vld [vmem:[#allocation12 + $0x10] sm:$0xff]
    %v910 = vld [vmem:[#allocation12 + $0x18] sm:$0xff]
    %v911 = vld [vmem:[#allocation12 + $0x20] sm:$0xff]
    %v912 = vld [vmem:[#allocation12 + $0x28] sm:$0xff]
    %v913 = vld [vmem:[#allocation12 + $0x30] sm:$0xff]
    %v914 = vld [vmem:[#allocation12 + $0x38] sm:$0xff]
    %v915 = vld [vmem:[#allocation12 + $0x40] sm:$0xff]
    %v916 = vld [vmem:[#allocation12 + $0x48] sm:$0xff]
    %v917 = vld [vmem:[#allocation12 + $0x50] sm:$0xff]
    %v918 = vld [vmem:[#allocation12 + $0x58] sm:$0xff]
    %v919 = vld [vmem:[#allocation12 + $0x60] sm:$0xff]
    %v920 = vld [vmem:[#allocation12 + $0x68] sm:$0xff]
    %v921 = vld [vmem:[#allocation12 + $0x70] sm:$0xff]
    %v922 = vld [vmem:[#allocation12 + $0x78] sm:$0xff]
    %v923 = vld [vmem:[#allocation12 + $0x80] sm:$0xff]
    %v924 = vld [vmem:[#allocation12 + $0x88] sm:$0xff]
    %v925 = vld [vmem:[#allocation12 + $0x90] sm:$0xff]
    %v926 = vld [vmem:[#allocation12 + $0x98] sm:$0xff]
    %v927 = vld [vmem:[#allocation12 + $0xa0] sm:$0xff]
    %v928 = vld [vmem:[#allocation12 + $0xa8] sm:$0xff]
    %v929 = vld [vmem:[#allocation12 + $0xb0] sm:$0xff]
    %v930 = vld [vmem:[#allocation12 + $0xb8] sm:$0xff]
    %v931 = vld [vmem:[#allocation12 + $0xc0] sm:$0xff]
    %v932 = vld [vmem:[#allocation12 + $0xc8] sm:$0xff]
    %v933 = vld [vmem:[#allocation12 + $0xd0] sm:$0xff]
    %v934 = vld [vmem:[#allocation12 + $0xd8] sm:$0xff]
    %v935 = vld [vmem:[#allocation12 + $0xe0] sm:$0xff]
    %v936 = vld [vmem:[#allocation12 + $0xe8] sm:$0xff]
    %v937 = vld [vmem:[#allocation12 + $0xf0] sm:$0xff]
    %v938 = vld [vmem:[#allocation12 + $0xf8] sm:$0xff]
    %v939 = vld [vmem:[#allocation12 + $0x100] sm:$0xff]
    %v940 = vld [vmem:[#allocation12 + $0x108] sm:$0xff]
    %v941 = vld [vmem:[#allocation12 + $0x110] sm:$0xff]
    %v942 = vld [vmem:[#allocation12 + $0x118] sm:$0xff]
    %v943 = vld [vmem:[#allocation12 + $0x120] sm:$0xff]
    %v944 = vld [vmem:[#allocation12 + $0x128] sm:$0xff]
    %v945 = vld [vmem:[#allocation12 + $0x130] sm:$0xff]
    %v946 = vld [vmem:[#allocation12 + $0x138] sm:$0xff]
    %v947 = vld [vmem:[#allocation12 + $0x140] sm:$0xff]
    %v948 = vld [vmem:[#allocation12 + $0x148] sm:$0xff]
    %v949 = vld [vmem:[#allocation12 + $0x150] sm:$0xff]
    %v950 = vld [vmem:[#allocation12 + $0x158] sm:$0xff]
    %v951 = vld [vmem:[#allocation12 + $0x160] sm:$0xff]
    %v952 = vld [vmem:[#allocation12 + $0x168] sm:$0xff]
    %v953 = vld [vmem:[#allocation12 + $0x170] sm:$0xff]
    %v954 = vld [vmem:[#allocation12 + $0x178] sm:$0xff]
    %v955 = vld [vmem:[#allocation12 + $0x180] sm:$0xff]
    %v956 = vld [vmem:[#allocation12 + $0x188] sm:$0xff]
    %v957 = vld [vmem:[#allocation12 + $0x190] sm:$0xff]
    %v958 = vld [vmem:[#allocation12 + $0x198] sm:$0xff]
    %v959 = vld [vmem:[#allocation12 + $0x1a0] sm:$0xff]
    %v960 = vld [vmem:[#allocation12 + $0x1a8] sm:$0xff]
    %v961 = vld [vmem:[#allocation12 + $0x1b0] sm:$0xff]
    %v962 = vld [vmem:[#allocation12 + $0x1b8] sm:$0xff]
    %v963 = vld [vmem:[#allocation12 + $0x1c0] sm:$0xff]
    %v964 = vld [vmem:[#allocation12 + $0x1c8] sm:$0xff]
    %v965 = vld [vmem:[#allocation12 + $0x1d0] sm:$0xff]
    %v966 = vld [vmem:[#allocation12 + $0x1d8] sm:$0xff]
    %v967 = vld [vmem:[#allocation12 + $0x1e0] sm:$0xff]
    %v968 = vld [vmem:[#allocation12 + $0x1e8] sm:$0xff]
    %v969 = vld [vmem:[#allocation12 + $0x1f0] sm:$0xff]
    %v970 = vld [vmem:[#allocation12 + $0x1f8] sm:$0xff]
    %v971 = vld [vmem:[#allocation13] sm:$0x3]
    %v973 = vlaneseq
    %v974 = vshrl.u32 %v973, 7
    %v975 = vsub.s32 0, %v974
    %v976 = vrot.slane %v971, %v975
    %v977 = vlaneseq
    %v978 = vshrl.u32 %v977, 7
    %v979 = vsub.s32 1, %v978
    %v980 = vrot.slane %v971, %v979
    %v1047 = vunpack.c.l.b16 %v907
    %v1048 = vunpack.c.h.b16 %v907
    %v1049 = vunpack.c.l.b16 %v908
    %v1050 = vunpack.c.h.b16 %v908
    %v1051 = vunpack.c.l.b16 %v909
    %v1052 = vunpack.c.h.b16 %v909
    %v1053 = vunpack.c.l.b16 %v910
    %v1054 = vunpack.c.h.b16 %v910
    %v1055 = vunpack.c.l.b16 %v911
    %v1056 = vunpack.c.h.b16 %v911
    %v1057 = vunpack.c.l.b16 %v912
    %v1058 = vunpack.c.h.b16 %v912
    %v1059 = vunpack.c.l.b16 %v913
    %v1060 = vunpack.c.h.b16 %v913
    %v1061 = vunpack.c.l.b16 %v914
    %v1062 = vunpack.c.h.b16 %v914
    %v1063 = vunpack.c.l.b16 %v915
    %v1064 = vunpack.c.h.b16 %v915
    %v1065 = vunpack.c.l.b16 %v916
    %v1066 = vunpack.c.h.b16 %v916
    %v1067 = vunpack.c.l.b16 %v917
    %v1068 = vunpack.c.h.b16 %v917
    %v1069 = vunpack.c.l.b16 %v918
    %v1070 = vunpack.c.h.b16 %v918
    %v1071 = vunpack.c.l.b16 %v919
    %v1072 = vunpack.c.h.b16 %v919
    %v1073 = vunpack.c.l.b16 %v920
    %v1074 = vunpack.c.h.b16 %v920
    %v1075 = vunpack.c.l.b16 %v921
    %v1076 = vunpack.c.h.b16 %v921
    %v1077 = vunpack.c.l.b16 %v922
    %v1078 = vunpack.c.h.b16 %v922
    %v1079 = vunpack.c.l.b16 %v923
    %v1080 = vunpack.c.h.b16 %v923
    %v1081 = vunpack.c.l.b16 %v924
    %v1082 = vunpack.c.h.b16 %v924
    %v1083 = vunpack.c.l.b16 %v925
    %v1084 = vunpack.c.h.b16 %v925
    %v1085 = vunpack.c.l.b16 %v926
    %v1086 = vunpack.c.h.b16 %v926
    %v1087 = vunpack.c.l.b16 %v927
    %v1088 = vunpack.c.h.b16 %v927
    %v1089 = vunpack.c.l.b16 %v928
    %v1090 = vunpack.c.h.b16 %v928
    %v1091 = vunpack.c.l.b16 %v929
    %v1092 = vunpack.c.h.b16 %v929
    %v1093 = vunpack.c.l.b16 %v930
    %v1094 = vunpack.c.h.b16 %v930
    %v1095 = vunpack.c.l.b16 %v931
    %v1096 = vunpack.c.h.b16 %v931
    %v1097 = vunpack.c.l.b16 %v932
    %v1098 = vunpack.c.h.b16 %v932
    %v1099 = vunpack.c.l.b16 %v933
    %v1100 = vunpack.c.h.b16 %v933
    %v1101 = vunpack.c.l.b16 %v934
    %v1102 = vunpack.c.h.b16 %v934
    %v1103 = vunpack.c.l.b16 %v935
    %v1104 = vunpack.c.h.b16 %v935
    %v1105 = vunpack.c.l.b16 %v936
    %v1106 = vunpack.c.h.b16 %v936
    %v1107 = vunpack.c.l.b16 %v937
    %v1108 = vunpack.c.h.b16 %v937
    %v1109 = vunpack.c.l.b16 %v938
    %v1110 = vunpack.c.h.b16 %v938
    %v1111 = vunpack.c.l.b16 %v939
    %v1112 = vunpack.c.h.b16 %v939
    %v1113 = vunpack.c.l.b16 %v940
    %v1114 = vunpack.c.h.b16 %v940
    %v1115 = vunpack.c.l.b16 %v941
    %v1116 = vunpack.c.h.b16 %v941
    %v1117 = vunpack.c.l.b16 %v942
    %v1118 = vunpack.c.h.b16 %v942
    %v1119 = vunpack.c.l.b16 %v943
    %v1120 = vunpack.c.h.b16 %v943
    %v1121 = vunpack.c.l.b16 %v944
    %v1122 = vunpack.c.h.b16 %v944
    %v1123 = vunpack.c.l.b16 %v945
    %v1124 = vunpack.c.h.b16 %v945
    %v1125 = vunpack.c.l.b16 %v946
    %v1126 = vunpack.c.h.b16 %v946
    %v1127 = vunpack.c.l.b16 %v947
    %v1128 = vunpack.c.h.b16 %v947
    %v1129 = vunpack.c.l.b16 %v948
    %v1130 = vunpack.c.h.b16 %v948
    %v1131 = vunpack.c.l.b16 %v949
    %v1132 = vunpack.c.h.b16 %v949
    %v1133 = vunpack.c.l.b16 %v950
    %v1134 = vunpack.c.h.b16 %v950
    %v1135 = vunpack.c.l.b16 %v951
    %v1136 = vunpack.c.h.b16 %v951
    %v1137 = vunpack.c.l.b16 %v952
    %v1138 = vunpack.c.h.b16 %v952
    %v1139 = vunpack.c.l.b16 %v953
    %v1140 = vunpack.c.h.b16 %v953
    %v1141 = vunpack.c.l.b16 %v954
    %v1142 = vunpack.c.h.b16 %v954
    %v1143 = vunpack.c.l.b16 %v955
    %v1144 = vunpack.c.h.b16 %v955
    %v1145 = vunpack.c.l.b16 %v956
    %v1146 = vunpack.c.h.b16 %v956
    %v1147 = vunpack.c.l.b16 %v957
    %v1148 = vunpack.c.h.b16 %v957
    %v1149 = vunpack.c.l.b16 %v958
    %v1150 = vunpack.c.h.b16 %v958
    %v1151 = vunpack.c.l.b16 %v959
    %v1152 = vunpack.c.h.b16 %v959
    %v1153 = vunpack.c.l.b16 %v960
    %v1154 = vunpack.c.h.b16 %v960
    %v1155 = vunpack.c.l.b16 %v961
    %v1156 = vunpack.c.h.b16 %v961
    %v1157 = vunpack.c.l.b16 %v962
    %v1158 = vunpack.c.h.b16 %v962
    %v1159 = vunpack.c.l.b16 %v963
    %v1160 = vunpack.c.h.b16 %v963
    %v1161 = vunpack.c.l.b16 %v964
    %v1162 = vunpack.c.h.b16 %v964
    %v1163 = vunpack.c.l.b16 %v965
    %v1164 = vunpack.c.h.b16 %v965
    %v1165 = vunpack.c.l.b16 %v966
    %v1166 = vunpack.c.h.b16 %v966
    %v1167 = vunpack.c.l.b16 %v967
    %v1168 = vunpack.c.h.b16 %v967
    %v1169 = vunpack.c.l.b16 %v968
    %v1170 = vunpack.c.h.b16 %v968
    %v1171 = vunpack.c.l.b16 %v969
    %v1172 = vunpack.c.h.b16 %v969
    %v1173 = vunpack.c.l.b16 %v970
    %v1174 = vunpack.c.h.b16 %v970
    %v1175 = vpack.c.b16 %v1049, %v1047
    %v1176 = vpack.c.b16 %v1050, %v1048
    %v1177 = vpack.c.b16 %v1053, %v1051
    %v1178 = vpack.c.b16 %v1054, %v1052
    %v1179 = vpack.c.b16 %v1057, %v1055
    %v1180 = vpack.c.b16 %v1058, %v1056
    %v1181 = vpack.c.b16 %v1061, %v1059
    %v1182 = vpack.c.b16 %v1062, %v1060
    %v1183 = vpack.c.b16 %v1065, %v1063
    %v1184 = vpack.c.b16 %v1066, %v1064
    %v1185 = vpack.c.b16 %v1069, %v1067
    %v1186 = vpack.c.b16 %v1070, %v1068
    %v1187 = vpack.c.b16 %v1073, %v1071
    %v1188 = vpack.c.b16 %v1074, %v1072
    %v1189 = vpack.c.b16 %v1077, %v1075
    %v1190 = vpack.c.b16 %v1078, %v1076
    %v1191 = vpack.c.b16 %v1081, %v1079
    %v1192 = vpack.c.b16 %v1082, %v1080
    %v1193 = vpack.c.b16 %v1085, %v1083
    %v1194 = vpack.c.b16 %v1086, %v1084
    %v1195 = vpack.c.b16 %v1089, %v1087
    %v1196 = vpack.c.b16 %v1090, %v1088
    %v1197 = vpack.c.b16 %v1093, %v1091
    %v1198 = vpack.c.b16 %v1094, %v1092
    %v1199 = vpack.c.b16 %v1097, %v1095
    %v1200 = vpack.c.b16 %v1098, %v1096
    %v1201 = vpack.c.b16 %v1101, %v1099
    %v1202 = vpack.c.b16 %v1102, %v1100
    %v1203 = vpack.c.b16 %v1105, %v1103
    %v1204 = vpack.c.b16 %v1106, %v1104
    %v1205 = vpack.c.b16 %v1109, %v1107
    %v1206 = vpack.c.b16 %v1110, %v1108
    %v1207 = vpack.c.b16 %v1113, %v1111
    %v1208 = vpack.c.b16 %v1114, %v1112
    %v1209 = vpack.c.b16 %v1117, %v1115
    %v1210 = vpack.c.b16 %v1118, %v1116
    %v1211 = vpack.c.b16 %v1121, %v1119
    %v1212 = vpack.c.b16 %v1122, %v1120
    %v1213 = vpack.c.b16 %v1125, %v1123
    %v1214 = vpack.c.b16 %v1126, %v1124
    %v1215 = vpack.c.b16 %v1129, %v1127
    %v1216 = vpack.c.b16 %v1130, %v1128
    %v1217 = vpack.c.b16 %v1133, %v1131
    %v1218 = vpack.c.b16 %v1134, %v1132
    %v1219 = vpack.c.b16 %v1137, %v1135
    %v1220 = vpack.c.b16 %v1138, %v1136
    %v1221 = vpack.c.b16 %v1141, %v1139
    %v1222 = vpack.c.b16 %v1142, %v1140
    %v1223 = vpack.c.b16 %v1145, %v1143
    %v1224 = vpack.c.b16 %v1146, %v1144
    %v1225 = vpack.c.b16 %v1149, %v1147
    %v1226 = vpack.c.b16 %v1150, %v1148
    %v1227 = vpack.c.b16 %v1153, %v1151
    %v1228 = vpack.c.b16 %v1154, %v1152
    %v1229 = vpack.c.b16 %v1157, %v1155
    %v1230 = vpack.c.b16 %v1158, %v1156
    %v1231 = vpack.c.b16 %v1161, %v1159
    %v1232 = vpack.c.b16 %v1162, %v1160
    %v1233 = vpack.c.b16 %v1165, %v1163
    %v1234 = vpack.c.b16 %v1166, %v1164
    %v1235 = vpack.c.b16 %v1169, %v1167
    %v1236 = vpack.c.b16 %v1170, %v1168
    %v1237 = vpack.c.b16 %v1173, %v1171
    %v1238 = vpack.c.b16 %v1174, %v1172
    %1303 = vmatprep.subr.bf16.mxu0 %v1176
    %1304 = vmatpush1.bf16.msra.mxu0 %v1175
    %1305 = vmatprep.subr.bf16.mxu0 %v1178
    %1306 = vmatpush1.bf16.msra.mxu0 %v1177
    %1307 = vmatprep.subr.bf16.mxu0 %v1180
    %1308 = vmatpush1.bf16.msra.mxu0 %v1179
    %1309 = vmatprep.subr.bf16.mxu0 %v1182
    %1310 = vmatpush1.bf16.msra.mxu0 %v1181
    %1311 = vmatprep.subr.bf16.mxu0 %v1184
    %1312 = vmatpush1.bf16.msra.mxu0 %v1183
    %1313 = vmatprep.subr.bf16.mxu0 %v1186
    %1314 = vmatpush1.bf16.msra.mxu0 %v1185
    %1315 = vmatprep.subr.bf16.mxu0 %v1188
    %1316 = vmatpush1.bf16.msra.mxu0 %v1187
    %1317 = vmatprep.subr.bf16.mxu0 %v1190
    %1318 = vmatpush1.bf16.msra.mxu0 %v1189
    %1319 = vmatprep.subr.bf16.mxu0 %v1192
    %1320 = vmatpush1.bf16.msra.mxu0 %v1191
    %1321 = vmatprep.subr.bf16.mxu0 %v1194
    %1322 = vmatpush1.bf16.msra.mxu0 %v1193
    %1323 = vmatprep.subr.bf16.mxu0 %v1196
    %1324 = vmatpush1.bf16.msra.mxu0 %v1195
    %1325 = vmatprep.subr.bf16.mxu0 %v1198
    %1326 = vmatpush1.bf16.msra.mxu0 %v1197
    %1327 = vmatprep.subr.bf16.mxu0 %v1200
    %1328 = vmatpush1.bf16.msra.mxu0 %v1199
    %1329 = vmatprep.subr.bf16.mxu0 %v1202
    %1330 = vmatpush1.bf16.msra.mxu0 %v1201
    %1331 = vmatprep.subr.bf16.mxu0 %v1204
    %1332 = vmatpush1.bf16.msra.mxu0 %v1203
    %1333 = vmatprep.subr.bf16.mxu0 %v1206
    %1334 = vmatpush1.bf16.msra.mxu0 %v1205
    %1335 = vmatprep.mubr.bf16.mxu0 %v904
    %1336 = vmatmul.mubr.bf16.gmra.mrb[0].mxu0 %v903
    %v1337 = vpop.f32.mrb[0].mxu0
    %v1338 = vadd.f32 %v976, %v1337
    %v1339 = vpop.f32.mrb[0].mxu0
    %v1340 = vadd.f32 %v980, %v1339
    %v1341 = vpop.f32.mrb[0].mxu0
    %v1342 = vpop.f32.mrb[0].mxu0
    %1343 = vdwg.mxu0
    %1344 = vmatprep.subr.bf16.mxu0 %v1208
    %1345 = vmatpush1.bf16.msra.mxu0 %v1207
    %1346 = vmatprep.subr.bf16.mxu0 %v1210
    %1347 = vmatpush1.bf16.msra.mxu0 %v1209
    %1348 = vmatprep.subr.bf16.mxu0 %v1212
    %1349 = vmatpush1.bf16.msra.mxu0 %v1211
    %1350 = vmatprep.subr.bf16.mxu0 %v1214
    %1351 = vmatpush1.bf16.msra.mxu0 %v1213
    %1352 = vmatprep.subr.bf16.mxu0 %v1216
    %1353 = vmatpush1.bf16.msra.mxu0 %v1215
    %1354 = vmatprep.subr.bf16.mxu0 %v1218
    %1355 = vmatpush1.bf16.msra.mxu0 %v1217
    %1356 = vmatprep.subr.bf16.mxu0 %v1220
    %1357 = vmatpush1.bf16.msra.mxu0 %v1219
    %1358 = vmatprep.subr.bf16.mxu0 %v1222
    %1359 = vmatpush1.bf16.msra.mxu0 %v1221
    %1360 = vmatprep.subr.bf16.mxu0 %v1224
    %1361 = vmatpush1.bf16.msra.mxu0 %v1223
    %1362 = vmatprep.subr.bf16.mxu0 %v1226
    %1363 = vmatpush1.bf16.msra.mxu0 %v1225
    %1364 = vmatprep.subr.bf16.mxu0 %v1228
    %1365 = vmatpush1.bf16.msra.mxu0 %v1227
    %1366 = vmatprep.subr.bf16.mxu0 %v1230
    %1367 = vmatpush1.bf16.msra.mxu0 %v1229
    %1368 = vmatprep.subr.bf16.mxu0 %v1232
    %1369 = vmatpush1.bf16.msra.mxu0 %v1231
    %1370 = vmatprep.subr.bf16.mxu0 %v1234
    %1371 = vmatpush1.bf16.msra.mxu0 %v1233
    %1372 = vmatprep.subr.bf16.mxu0 %v1236
    %1373 = vmatpush1.bf16.msra.mxu0 %v1235
    %1374 = vmatprep.subr.bf16.mxu0 %v1238
    %1375 = vmatpush1.bf16.msra.mxu0 %v1237
    %1376 = vmatprep.mubr.bf16.mxu0 %v906
    %1377 = vmatmul.mubr.bf16.gmra.mrb[0].mxu0 %v905
    %v1378 = vpop.f32.mrb[0].mxu0
    %v1379 = vadd.f32 %v1338, %v1378
    %v1380 = vpop.f32.mrb[0].mxu0
    %v1381 = vadd.f32 %v1340, %v1380
    %v1382 = vpop.f32.mrb[0].mxu0
    %v1383 = vpop.f32.mrb[0].mxu0
    %1384 = vdwg.mxu0
    %v1385 = vmax.f32 %v1379, 0.0
    %v1386 = vmax.f32 %v1381, 0.0
    %v1387 = vpack.c.bf16 %v1385, %v1385
    %v1388 = vpack.c.bf16 %v1386, %v1386
    %v1389 = vld [vmem:[#allocation15] sm:$0xf]
    %v1390 = vld [vmem:[#allocation15 + $0x4] sm:$0xf]
    %v1391 = vld [vmem:[#allocation15 + $0x8] sm:$0xf]
    %v1392 = vld [vmem:[#allocation15 + $0xc] sm:$0xf]
    %v1393 = vld [vmem:[#allocation15 + $0x10] sm:$0xf]
    %v1394 = vld [vmem:[#allocation15 + $0x14] sm:$0xf]
    %v1395 = vld [vmem:[#allocation15 + $0x18] sm:$0xf]
    %v1396 = vld [vmem:[#allocation15 + $0x1c] sm:$0xf]
    %v1397 = vld [vmem:[#allocation15 + $0x20] sm:$0xf]
    %v1398 = vld [vmem:[#allocation15 + $0x24] sm:$0xf]
    %v1399 = vld [vmem:[#allocation15 + $0x28] sm:$0xf]
    %v1400 = vld [vmem:[#allocation15 + $0x2c] sm:$0xf]
    %v1401 = vld [vmem:[#allocation15 + $0x30] sm:$0xf]
    %v1402 = vld [vmem:[#allocation15 + $0x34] sm:$0xf]
    %v1403 = vld [vmem:[#allocation15 + $0x38] sm:$0xf]
    %v1404 = vld [vmem:[#allocation15 + $0x3c] sm:$0xf]
    %v1405 = vld [vmem:[#allocation15 + $0x40] sm:$0xf]
    %v1406 = vld [vmem:[#allocation15 + $0x44] sm:$0xf]
    %v1407 = vld [vmem:[#allocation15 + $0x48] sm:$0xf]
    %v1408 = vld [vmem:[#allocation15 + $0x4c] sm:$0xf]
    %v1409 = vld [vmem:[#allocation15 + $0x50] sm:$0xf]
    %v1410 = vld [vmem:[#allocation15 + $0x54] sm:$0xf]
    %v1411 = vld [vmem:[#allocation15 + $0x58] sm:$0xf]
    %v1412 = vld [vmem:[#allocation15 + $0x5c] sm:$0xf]
    %v1413 = vld [vmem:[#allocation15 + $0x60] sm:$0xf]
    %v1414 = vld [vmem:[#allocation15 + $0x64] sm:$0xf]
    %v1415 = vld [vmem:[#allocation15 + $0x68] sm:$0xf]
    %v1416 = vld [vmem:[#allocation15 + $0x6c] sm:$0xf]
    %v1417 = vld [vmem:[#allocation15 + $0x70] sm:$0xf]
    %v1418 = vld [vmem:[#allocation15 + $0x74] sm:$0xf]
    %v1419 = vld [vmem:[#allocation15 + $0x78] sm:$0xf]
    %v1420 = vld [vmem:[#allocation15 + $0x7c] sm:$0xf]
    %v1421 = vld [vmem:[%s10] sm:$0x1]
    %v1423 = vlaneseq
    %v1424 = vshrl.u32 %v1423, 7
    %v1425 = vsub.s32 0, %v1424
    %v1426 = vrot.slane %v1421, %v1425
    %v1460 = vunpack.c.l.b16 %v1389
    %v1461 = vunpack.c.l.b16 %v1390
    %v1462 = vunpack.c.l.b16 %v1391
    %v1463 = vunpack.c.l.b16 %v1392
    %v1464 = vunpack.c.l.b16 %v1393
    %v1465 = vunpack.c.l.b16 %v1394
    %v1466 = vunpack.c.l.b16 %v1395
    %v1467 = vunpack.c.l.b16 %v1396
    %v1468 = vunpack.c.l.b16 %v1397
    %v1469 = vunpack.c.l.b16 %v1398
    %v1470 = vunpack.c.l.b16 %v1399
    %v1471 = vunpack.c.l.b16 %v1400
    %v1472 = vunpack.c.l.b16 %v1401
    %v1473 = vunpack.c.l.b16 %v1402
    %v1474 = vunpack.c.l.b16 %v1403
    %v1475 = vunpack.c.l.b16 %v1404
    %v1476 = vunpack.c.l.b16 %v1405
    %v1477 = vunpack.c.l.b16 %v1406
    %v1478 = vunpack.c.l.b16 %v1407
    %v1479 = vunpack.c.l.b16 %v1408
    %v1480 = vunpack.c.l.b16 %v1409
    %v1481 = vunpack.c.l.b16 %v1410
    %v1482 = vunpack.c.l.b16 %v1411
    %v1483 = vunpack.c.l.b16 %v1412
    %v1484 = vunpack.c.l.b16 %v1413
    %v1485 = vunpack.c.l.b16 %v1414
    %v1486 = vunpack.c.l.b16 %v1415
    %v1487 = vunpack.c.l.b16 %v1416
    %v1488 = vunpack.c.l.b16 %v1417
    %v1489 = vunpack.c.l.b16 %v1418
    %v1490 = vunpack.c.l.b16 %v1419
    %v1491 = vunpack.c.l.b16 %v1420
    %v1492 = vpack.c.b16 %v1461, %v1460
    %v1493 = vpack.c.b16 %v1463, %v1462
    %v1494 = vpack.c.b16 %v1465, %v1464
    %v1495 = vpack.c.b16 %v1467, %v1466
    %v1496 = vpack.c.b16 %v1469, %v1468
    %v1497 = vpack.c.b16 %v1471, %v1470
    %v1498 = vpack.c.b16 %v1473, %v1472
    %v1499 = vpack.c.b16 %v1475, %v1474
    %v1500 = vpack.c.b16 %v1477, %v1476
    %v1501 = vpack.c.b16 %v1479, %v1478
    %v1502 = vpack.c.b16 %v1481, %v1480
    %v1503 = vpack.c.b16 %v1483, %v1482
    %v1504 = vpack.c.b16 %v1485, %v1484
    %v1505 = vpack.c.b16 %v1487, %v1486
    %v1506 = vpack.c.b16 %v1489, %v1488
    %v1507 = vpack.c.b16 %v1491, %v1490
    %1524 = vmatprep.subr.bf16.mxu0 0
    %1525 = vmatpush1.bf16.msra.mxu0 %v1492
    %1526 = vmatprep.subr.bf16.mxu0 0
    %1527 = vmatpush1.bf16.msra.mxu0 %v1493
    %1528 = vmatprep.subr.bf16.mxu0 0
    %1529 = vmatpush1.bf16.msra.mxu0 %v1494
    %1530 = vmatprep.subr.bf16.mxu0 0
    %1531 = vmatpush1.bf16.msra.mxu0 %v1495
    %1532 = vmatprep.subr.bf16.mxu0 0
    %1533 = vmatpush1.bf16.msra.mxu0 %v1496
    %1534 = vmatprep.subr.bf16.mxu0 0
    %1535 = vmatpush1.bf16.msra.mxu0 %v1497
    %1536 = vmatprep.subr.bf16.mxu0 0
    %1537 = vmatpush1.bf16.msra.mxu0 %v1498
    %1538 = vmatprep.subr.bf16.mxu0 0
    %1539 = vmatpush1.bf16.msra.mxu0 %v1499
    %1540 = vmatprep.subr.bf16.mxu0 0
    %1541 = vmatpush1.bf16.msra.mxu0 %v1500
    %1542 = vmatprep.subr.bf16.mxu0 0
    %1543 = vmatpush1.bf16.msra.mxu0 %v1501
    %1544 = vmatprep.subr.bf16.mxu0 0
    %1545 = vmatpush1.bf16.msra.mxu0 %v1502
    %1546 = vmatprep.subr.bf16.mxu0 0
    %1547 = vmatpush1.bf16.msra.mxu0 %v1503
    %1548 = vmatprep.subr.bf16.mxu0 0
    %1549 = vmatpush1.bf16.msra.mxu0 %v1504
    %1550 = vmatprep.subr.bf16.mxu0 0
    %1551 = vmatpush1.bf16.msra.mxu0 %v1505
    %1552 = vmatprep.subr.bf16.mxu0 0
    %1553 = vmatpush1.bf16.msra.mxu0 %v1506
    %1554 = vmatprep.subr.bf16.mxu0 0
    %1555 = vmatpush1.bf16.msra.mxu0 %v1507
    %1556 = vmatprep.mubr.bf16.mxu0 %v1388
    %1557 = vmatmul.mubr.bf16.gmra.mrb[0].mxu0 %v1387
    %v1558 = vpop.f32.mrb[0].mxu0
    %v1559 = vadd.f32 %v1426, %v1558
    %v1560 = vpop.f32.mrb[0].mxu0
    %v1561 = vpop.f32.mrb[0].mxu0
    %v1562 = vpop.f32.mrb[0].mxu0
    %1563 = vdwg.mxu0
    %v1564 = vmax.f32 %v1559, 0.0
    %v1565 = vpack.c.bf16 %v1564, %v1564
    %v1566 = vld [vmem:[%s11] sm:$0xf]
    %v1567 = vld [vmem:[%s11 + $0x4] sm:$0xf]
    %v1568 = vld [vmem:[%s11 + $0x8] sm:$0xf]
    %v1569 = vld [vmem:[%s11 + $0xc] sm:$0xf]
    %v1570 = vld [vmem:[%s11 + $0x10] sm:$0xf]
    %v1571 = vld [vmem:[%s11 + $0x14] sm:$0xf]
    %v1572 = vld [vmem:[%s11 + $0x18] sm:$0xf]
    %v1573 = vld [vmem:[%s11 + $0x1c] sm:$0xf]
    %v1574 = vld [vmem:[%s11 + $0x20] sm:$0xf]
    %v1575 = vld [vmem:[%s11 + $0x24] sm:$0xf]
    %v1576 = vld [vmem:[%s11 + $0x28] sm:$0xf]
    %v1577 = vld [vmem:[%s11 + $0x2c] sm:$0xf]
    %v1578 = vld [vmem:[%s11 + $0x30] sm:$0xf]
    %v1579 = vld [vmem:[%s11 + $0x34] sm:$0xf]
    %v1580 = vld [vmem:[%s11 + $0x38] sm:$0xf]
    %v1581 = vld [vmem:[%s11 + $0x3c] sm:$0xf]
    %v1582 = vld [vmem:[%s12] sm:$0x1]
    %v1584 = vlaneseq
    %v1585 = vshrl.u32 %v1584, 7
    %v1586 = vsub.s32 0, %v1585
    %v1587 = vrot.slane %v1582, %v1586
    %v1605 = vunpack.c.l.b16 %v1566
    %v1606 = vunpack.c.l.b16 %v1567
    %v1607 = vunpack.c.l.b16 %v1568
    %v1608 = vunpack.c.l.b16 %v1569
    %v1609 = vunpack.c.l.b16 %v1570
    %v1610 = vunpack.c.l.b16 %v1571
    %v1611 = vunpack.c.l.b16 %v1572
    %v1612 = vunpack.c.l.b16 %v1573
    %v1613 = vunpack.c.l.b16 %v1574
    %v1614 = vunpack.c.l.b16 %v1575
    %v1615 = vunpack.c.l.b16 %v1576
    %v1616 = vunpack.c.l.b16 %v1577
    %v1617 = vunpack.c.l.b16 %v1578
    %v1618 = vunpack.c.l.b16 %v1579
    %v1619 = vunpack.c.l.b16 %v1580
    %v1620 = vunpack.c.l.b16 %v1581
    %v1621 = vpack.c.b16 %v1606, %v1605
    %v1622 = vpack.c.b16 %v1608, %v1607
    %v1623 = vpack.c.b16 %v1610, %v1609
    %v1624 = vpack.c.b16 %v1612, %v1611
    %v1625 = vpack.c.b16 %v1614, %v1613
    %v1626 = vpack.c.b16 %v1616, %v1615
    %v1627 = vpack.c.b16 %v1618, %v1617
    %v1628 = vpack.c.b16 %v1620, %v1619
    %1637 = vmatprep.subr.bf16.mxu0 0
    %1638 = vmatpush1.bf16.msra.mxu0 %v1621
    %1639 = vmatprep.subr.bf16.mxu0 0
    %1640 = vmatpush1.bf16.msra.mxu0 %v1622
    %1641 = vmatprep.subr.bf16.mxu0 0
    %1642 = vmatpush1.bf16.msra.mxu0 %v1623
    %1643 = vmatprep.subr.bf16.mxu0 0
    %1644 = vmatpush1.bf16.msra.mxu0 %v1624
    %1645 = vmatprep.subr.bf16.mxu0 0
    %1646 = vmatpush1.bf16.msra.mxu0 %v1625
    %1647 = vmatprep.subr.bf16.mxu0 0
    %1648 = vmatpush1.bf16.msra.mxu0 %v1626
    %1649 = vmatprep.subr.bf16.mxu0 0
    %1650 = vmatpush1.bf16.msra.mxu0 %v1627
    %1651 = vmatprep.subr.bf16.mxu0 0
    %1652 = vmatpush1.bf16.msra.mxu0 %v1628
    %1653 = vmatprep.subr.bf16.mxu0 0
    %1654 = vmatpush1.bf16.msra.mxu0 0
    %1655 = vmatprep.subr.bf16.mxu0 0
    %1656 = vmatpush1.bf16.msra.mxu0 0
    %1657 = vmatprep.subr.bf16.mxu0 0
    %1658 = vmatpush1.bf16.msra.mxu0 0
    %1659 = vmatprep.subr.bf16.mxu0 0
    %1660 = vmatpush1.bf16.msra.mxu0 0
    %1661 = vmatprep.subr.bf16.mxu0 0
    %1662 = vmatpush1.bf16.msra.mxu0 0
    %1663 = vmatprep.subr.bf16.mxu0 0
    %1664 = vmatpush1.bf16.msra.mxu0 0
    %1665 = vmatprep.subr.bf16.mxu0 0
    %1666 = vmatpush1.bf16.msra.mxu0 0
    %1667 = vmatprep.subr.bf16.mxu0 0
    %1668 = vmatpush1.bf16.msra.mxu0 0
    %1669 = vmatprep.mubr.bf16.mxu0 0
    %1670 = vmatmul.mubr.bf16.gmra.mrb[0].mxu0 %v1565
    %v1671 = vpop.f32.mrb[0].mxu0
    %v1672 = vadd.f32 %v1587, %v1671
    %v1673 = vpop.f32.mrb[0].mxu0
    %v1674 = vpop.f32.mrb[0].mxu0
    %v1675 = vpop.f32.mrb[0].mxu0
    %1676 = vdwg.mxu0
    %v1677 = vmax.f32 %v1672, 0.0
    %v1678 = vpack.c.bf16 %v1677, %v1677
    %v1679 = vld [vmem:[%s13] sm:$0xf]
    %v1680 = vld [vmem:[%s13 + $0x4] sm:$0xf]
    %v1681 = vld [vmem:[%s13 + $0x8] sm:$0xf]
    %v1682 = vld [vmem:[%s13 + $0xc] sm:$0xf]
    %v1683 = vld [vmem:[%s13 + $0x10] sm:$0xf]
    %v1684 = vld [vmem:[%s13 + $0x14] sm:$0xf]
    %v1685 = vld [vmem:[%s13 + $0x18] sm:$0xf]
    %v1686 = vld [vmem:[%s13 + $0x1c] sm:$0xf]
    %v1687 = vld [vmem:[%s14] sm:$0x1]
    %v1689 = vlaneseq
    %v1690 = vshrl.u32 %v1689, 7
    %v1691 = vsub.s32 0, %v1690
    %v1692 = vrot.slane %v1687, %v1691
    %v1702 = vunpack.c.l.b16 %v1679
    %v1703 = vunpack.c.l.b16 %v1680
    %v1704 = vunpack.c.l.b16 %v1681
    %v1705 = vunpack.c.l.b16 %v1682
    %v1706 = vunpack.c.l.b16 %v1683
    %v1707 = vunpack.c.l.b16 %v1684
    %v1708 = vunpack.c.l.b16 %v1685
    %v1709 = vunpack.c.l.b16 %v1686
    %v1710 = vpack.c.b16 %v1703, %v1702
    %v1711 = vpack.c.b16 %v1705, %v1704
    %v1712 = vpack.c.b16 %v1707, %v1706
    %v1713 = vpack.c.b16 %v1709, %v1708
    %vm1718 = vcmask 523264
    %v1720 = vsel %vm1718, %v1678, 0
    %1722 = vmatprep.subr.bf16.mxu0 0
    %1723 = vmatpush1.bf16.msra.mxu0 %v1710
    %1724 = vmatprep.subr.bf16.mxu0 0
    %1725 = vmatpush1.bf16.msra.mxu0 %v1711
    %1726 = vmatprep.subr.bf16.mxu0 0
    %1727 = vmatpush1.bf16.msra.mxu0 %v1712
    %1728 = vmatprep.subr.bf16.mxu0 0
    %1729 = vmatpush1.bf16.msra.mxu0 %v1713
    %1730 = vmatprep.subr.bf16.mxu0 0
    %1731 = vmatpush1.bf16.msra.mxu0 0
    %1732 = vmatprep.subr.bf16.mxu0 0
    %1733 = vmatpush1.bf16.msra.mxu0 0
    %1734 = vmatprep.subr.bf16.mxu0 0
    %1735 = vmatpush1.bf16.msra.mxu0 0
    %1736 = vmatprep.subr.bf16.mxu0 0
    %1737 = vmatpush1.bf16.msra.mxu0 0
    %1738 = vmatprep.subr.bf16.mxu0 0
    %1739 = vmatpush1.bf16.msra.mxu0 0
    %1740 = vmatprep.subr.bf16.mxu0 0
    %1741 = vmatpush1.bf16.msra.mxu0 0
    %1742 = vmatprep.subr.bf16.mxu0 0
    %1743 = vmatpush1.bf16.msra.mxu0 0
    %1744 = vmatprep.subr.bf16.mxu0 0
    %1745 = vmatpush1.bf16.msra.mxu0 0
    %1746 = vmatprep.subr.bf16.mxu0 0
    %1747 = vmatpush1.bf16.msra.mxu0 0
    %1748 = vmatprep.subr.bf16.mxu0 0
    %1749 = vmatpush1.bf16.msra.mxu0 0
    %1750 = vmatprep.subr.bf16.mxu0 0
    %1751 = vmatpush1.bf16.msra.mxu0 0
    %1752 = vmatprep.subr.bf16.mxu0 0
    %1753 = vmatpush1.bf16.msra.mxu0 0
    %1754 = vmatprep.mubr.bf16.mxu0 0
    %1755 = vmatmul.mubr.bf16.gmra.mrb[0].mxu0 %v1720
    %v1756 = vpop.f32.mrb[0].mxu0
    %v1757 = vadd.f32 %v1692, %v1756
    %v1758 = vpop.f32.mrb[0].mxu0
    %v1759 = vpop.f32.mrb[0].mxu0
    %v1760 = vpop.f32.mrb[0].mxu0
    %1761 = vdwg.mxu0
    %vm1762 = vcmask 31744
    %1763 = vst.msk [vmem:[%s15] sm:$0xff] %vm1762, %v1757
    // Predicated region
    $region98: #{tpu_custom_call.1} parent=1 // pred_check
      _
    $region99: #{tpu_custom_call.1} parent=1 // pred_check_branch
      %1765 = sbr.rel (0) target = $region101
    $region100: #{tpu_custom_call.1} parent=1 // pred_region
      _
    $region101: #{tpu_custom_call.1} parent=1 // pred_fallthru
      _
    // Predicated region
    $region102: #{tpu_custom_call.1} parent=1 // pred_check
      _
    $region103: #{tpu_custom_call.1} parent=1 // pred_check_branch
      %1767 = sbr.rel (0) target = $region105
    $region104: #{tpu_custom_call.1} parent=1 // pred_region
      _
    $region105: #{tpu_custom_call.1} parent=1 // pred_fallthru
      _
    %1768 = vsyncpa [#allocation3], 1
    %1769 = vsyncpa [#allocation5], 1
    %1770 = vsyncpa [#allocation8], 1
    %1771 = vsyncpa [#allocation11], 1
    %1772 = vsyncpa [#allocation14], 1

</llo_original>
